<compile_context>
chip_gen: v7x
topology: tpu7x:2x2x1
jax: 0.10.0
libtpu: 0.0.40
codegen_flags: <defaults>
</compile_context>

<pallas_src>
import functools
import math

import jax
import jax.numpy as jnp
from jax.experimental import pallas as pl
from jax.experimental.pallas import tpu as pltpu


# ----------------------------------------------------------------------------
# Tile-size helpers
# ----------------------------------------------------------------------------
def _pick_tile(dim, cap, align):
    """Largest `align`-multiple <= cap that divides `dim`; full dim if dim <= cap."""
    if dim <= cap:
        return dim                       # full-extent block is always layout-legal
    start = (cap // align) * align
    for t in range(start, 0, -align):
        if dim % t == 0:
            return t
    # TODO(synk): no aligned divisor <= cap (awkward dim); falls back to a
    # full-dim block which may exceed VMEM for very long sequences.
    return dim


def _attn_vmem_bytes(hb, tq, tkv, dh):
    """Per-grid-step resident VMEM for the attention kernel: double-buffered
    q/k/v/out blocks, all scratches (incl. the 128-lane padding of m/l) and a
    rough upper bound on the f32 score/exp temporaries."""
    bf16, f32, lanes = 2, 4, 128
    q_in = 2 * hb * tq * dh * bf16            # double-buffered q block
    kv_in = 2 * 2 * hb * tkv * dh * bf16      # double-buffered k and v blocks
    out = 2 * tq * hb * dh * bf16             # double-buffered output block
    q_sc = hb * tq * dh * bf16                # cached (scale-folded) q
    ml_sc = 2 * hb * tq * lanes * f32         # m/l: last dim 1 pads to 128 lanes
    acc_sc = hb * tq * dh * f32
    tmp = 3 * hb * tq * tkv * f32             # scores + exp temporaries
    return q_in + kv_in + out + q_sc + ml_sc + acc_sc + tmp


def _pick_head_block(n_head, d_head, tq, tkv, batch, n_qblk, budget_bytes=12 << 20):
    """Heads per attention grid step.
       * lane-dense output: hblk * d_head % 128 == 0, or hblk == n_head
       * conservative VMEM budget that also works on v7x (64 MiB physical)
       * prefer >= 2 parallel grid units so both v7x TensorCores stay busy."""
    valid = [hb for hb in range(1, n_head + 1)
             if n_head % hb == 0 and (hb == n_head or (hb * d_head) % 128 == 0)]
    fitting = [hb for hb in sorted(valid, reverse=True)
               if _attn_vmem_bytes(hb, tq, tkv, d_head) <= budget_bytes]
    if not fitting:
        return min(valid)
    for hb in fitting:                        # largest first
        if batch * (n_head // hb) * n_qblk >= 2:
            return hb
    return fitting[0]


def _default_tkv_cap():
    """KV tile: 256 fills the 256-deep MXU on v6e/v7x; 128 is enough for v5e."""
    try:
        kind = jax.devices()[0].device_kind.lower()
    except Exception:
        kind = ""
    return 128 if "v5" in kind else 256


# ----------------------------------------------------------------------------
# Conv1D kernel:  y = x @ W + b   (x: [M,K], W: [K,N], b: [N])
# ----------------------------------------------------------------------------
def _linear_kernel(x_ref, w_ref, b_ref, o_ref, acc_ref):
    @pl.when(pl.program_id(2) == 0)
    def _init():
        acc_ref[...] = jnp.zeros(acc_ref.shape, dtype=acc_ref.dtype)

    acc_ref[...] += jnp.dot(x_ref[...], w_ref[...],
                            preferred_element_type=jnp.float32)

    @pl.when(pl.program_id(2) == pl.num_programs(2) - 1)
    def _finalize():
        o_ref[...] = (acc_ref[...] + b_ref[...]).astype(o_ref.dtype)


def conv1d(x2d, w, b, out_dtype=None):
    """Pallas addmm: x2d [M,K] @ w [K,N] + b [N] -> [M,N] (bf16 MXU, f32 acc)."""
    M, K = x2d.shape
    N = w.shape[1]
    out_dtype = x2d.dtype if out_dtype is None else out_dtype

    tm = _pick_tile(M, 1024, 8)      # sublane dim: multiple of 8
    tn = _pick_tile(N, 1024, 128)    # lane dim:   multiple of 128
    tk = _pick_tile(K, 512, 128)

    xb = x2d.astype(jnp.bfloat16)
    wb = w.astype(jnp.bfloat16)
    b2d = b.reshape(1, N).astype(jnp.float32)

    grid = (M // tm, N // tn, K // tk)
    out_bpe = jnp.dtype(out_dtype).itemsize
    cost = pl.CostEstimate(
        flops=2 * M * K * N,
        transcendentals=0,
        bytes_accessed=M * K * 2 + K * N * 2 + M * N * out_bpe + N * 4)

    return pl.pallas_call(
        _linear_kernel,
        out_shape=jax.ShapeDtypeStruct((M, N), out_dtype),
        grid=grid,
        in_specs=[
            pl.BlockSpec((tm, tk), lambda i, j, k: (i, k)),
            pl.BlockSpec((tk, tn), lambda i, j, k: (k, j)),
            pl.BlockSpec((1, tn), lambda i, j, k: (0, j)),
        ],
        out_specs=pl.BlockSpec((tm, tn), lambda i, j, k: (i, j)),
        scratch_shapes=[pltpu.VMEM((tm, tn), jnp.float32)],
        compiler_params=pltpu.CompilerParams(
            dimension_semantics=("parallel", "parallel", "arbitrary"),
            vmem_limit_bytes=32 * 1024 * 1024),
        cost_estimate=cost,
    )(xb, wb, b2d)


# ----------------------------------------------------------------------------
# Attention core: flash-style online softmax, Q and KV both tiled.
#   grid = (B, H//hblk, T//tq, T//tkv); kv innermost (reduction).
#   Output written lane-dense as [B, T, C] with heads merged in-kernel.
# ----------------------------------------------------------------------------
def _attn_kernel(q_ref, k_ref, v_ref, o_ref, q_sc, m_sc, l_sc, acc_sc, *, scale):
    hblk, tq, dh = q_sc.shape
    tkv = k_ref.shape[2]

    qi = pl.program_id(2)
    kv = pl.program_id(3)
    q_start = qi * tq          # first query row of this block (global index)
    kv_start = kv * tkv        # first key column of this block (global index)

    @pl.when(kv == 0)
    def _init():
        m_sc[...] = jnp.full(m_sc.shape, -jnp.inf, dtype=m_sc.dtype)
        l_sc[...] = jnp.zeros(l_sc.shape, dtype=l_sc.dtype)
        acc_sc[...] = jnp.zeros(acc_sc.shape, dtype=acc_sc.dtype)
        # cache scale-folded bf16 Q once per Q-block; reused for all KV steps
        q = q_ref[0]                                   # (hblk, tq, Dh) bf16
        if scale:
            q = (q * (1.0 / math.sqrt(dh))).astype(q_sc.dtype)
        q_sc[...] = q

    def _update(apply_mask):
        kb = k_ref[0]                                  # (hblk, tkv, Dh) bf16
        vb = v_ref[0]
        # contract on Dh directly (no kT materialization anywhere)
        s = jnp.einsum("hqd,hkd->hqk", q_sc[...], kb,
                       preferred_element_type=jnp.float32)
        if apply_mask:  # only on diagonal blocks (static branch per pl.when arm)
            row = jax.lax.broadcasted_iota(jnp.int32, s.shape, 1) + q_start
            col = jax.lax.broadcasted_iota(jnp.int32, s.shape, 2) + kv_start
            s = jnp.where(col <= row, s, -1e10)        # matches torch: -1e10
        # online softmax update (f32)
        m_prev = m_sc[...]
        m_new = jnp.maximum(m_prev, jnp.max(s, axis=-1, keepdims=True))
        alpha = jnp.exp(m_prev - m_new)
        p = jnp.exp(s - m_new)
        l_sc[...] = alpha * l_sc[...] + jnp.sum(p, axis=-1, keepdims=True)
        acc_sc[...] = alpha * acc_sc[...] + jnp.einsum(
            "hqk,hkd->hqd", p.astype(vb.dtype), vb,
            preferred_element_type=jnp.float32)
        m_sc[...] = m_new

    # Causal block classification (runtime scalars):
    #   fully_visible : every column <= every row        -> no mask needed
    #   visible_any   : at least one column <= some row  -> otherwise skip block
    fully_visible = (kv_start + tkv - 1) <= q_start
    visible_any = kv_start <= (q_start + tq - 1)

    @pl.when(jnp.logical_and(visible_any, jnp.logical_not(fully_visible)))
    def _diag_block():
        _update(apply_mask=True)

    @pl.when(fully_visible)
    def _full_block():
        _update(apply_mask=False)
    # fully-masked blocks (kv_start > q_end): QK^T / softmax / PV entirely skipped

    @pl.when(kv == pl.num_programs(3) - 1)
    def _finalize():
        inv_l = pl.reciprocal(l_sc[...], approx=True)  # (hblk, tq, 1), EUP
        # merge heads in-kernel: per-head static-slice stores into the
        # lane-dense (tq, hblk*Dh) output block (finalize only, not per KV step)
        for h in range(hblk):
            o_ref[0, :, h * dh:(h + 1) * dh] = (
                acc_sc[h] * inv_l[h]).astype(o_ref.dtype)


def attention_core(q, k, v, scale):
    """q, k, v: [B, H, T, Dh] (bf16) -> [B, T, H*Dh] (bf16, heads merged)."""
    B, H, T, Dh = q.shape
    C = H * Dh

    tkv = _pick_tile(T, _default_tkv_cap(), 128)
    tq = _pick_tile(T, 512, 128)
    n_qblk = T // tq
    hblk = _pick_head_block(H, Dh, tq, tkv, B, n_qblk)
    grid = (B, H // hblk, n_qblk, T // tkv)

    bpe = jnp.dtype(q.dtype).itemsize
    cost = pl.CostEstimate(
        flops=2 * B * H * T * T * Dh,            # ~causal half of the dense count
        transcendentals=B * H * T * T // 2,
        bytes_accessed=3 * B * H * T * Dh * bpe + B * T * C * bpe)

    kernel = functools.partial(_attn_kernel, scale=scale)
    return pl.pallas_call(
        kernel,
        out_shape=jax.ShapeDtypeStruct((B, T, C), q.dtype),
        grid=grid,
        in_specs=[
            pl.BlockSpec((1, hblk, tq, Dh), lambda b, h, qi, kv: (b, h, qi, 0)),
            pl.BlockSpec((1, hblk, tkv, Dh), lambda b, h, qi, kv: (b, h, kv, 0)),
            pl.BlockSpec((1, hblk, tkv, Dh), lambda b, h, qi, kv: (b, h, kv, 0)),
        ],
        out_specs=pl.BlockSpec((1, tq, hblk * Dh), lambda b, h, qi, kv: (b, qi, h)),
        scratch_shapes=[
            pltpu.VMEM((hblk, tq, Dh), q.dtype),       # scale-folded Q cache (bf16)
            pltpu.VMEM((hblk, tq, 1), jnp.float32),    # running max m
            pltpu.VMEM((hblk, tq, 1), jnp.float32),    # running denom l
            pltpu.VMEM((hblk, tq, Dh), jnp.float32),   # output accumulator
        ],
        compiler_params=pltpu.CompilerParams(
            dimension_semantics=("parallel", "parallel", "parallel", "arbitrary"),
            vmem_limit_bytes=32 * 1024 * 1024),
        cost_estimate=cost,
    )(q, k, v)


# ----------------------------------------------------------------------------
# Full Attention.forward
# ----------------------------------------------------------------------------
def attention_forward(x, params, n_head, n_ctx, scale=False):
    """x: [B, T, C].  Returns (a [B,T,C], present [2,B,H,T,Dh])."""
    B, T, C = x.shape
    assert T <= n_ctx
    assert C % n_head == 0
    Dh = C // n_head

    # c_attn: [B,T,C] -> [B,T,3C]   (bf16 intermediate: halves HBM traffic for
    # the split/transpose round trips and for the streamed K/V blocks)
    qkv = conv1d(x.reshape(B * T, C), params["w_attn"], params["b_attn"],
                 out_dtype=jnp.bfloat16)
    qkv = qkv.reshape(B, T, 3 * C)
    q, k, v = jnp.split(qkv, 3, axis=2)

    # split_heads in bf16 (k kept as [B,H,T,Dh]; no kT transpose anywhere)
    q = q.reshape(B, T, n_head, Dh).transpose(0, 2, 1, 3)
    k = k.reshape(B, T, n_head, Dh).transpose(0, 2, 1, 3)
    v = v.reshape(B, T, n_head, Dh).transpose(0, 2, 1, 3)

    # attention core returns merged heads, lane-dense: [B, T, C] (bf16)
    a = attention_core(q, k, v, scale)

    # c_proj (final output in the input dtype)
    a = conv1d(a.reshape(B * T, C), params["w_proj"], params["b_proj"],
               out_dtype=x.dtype)
    a = a.reshape(B, T, C)

    # present = stack((key.transpose(-2,-1), value)) == stack((k, v)) here
    present = jnp.stack([k, v], axis=0).astype(x.dtype)
    return a, present


# ----------------------------------------------------------------------------
def init_params(key, nx):
    """Matches the torch module init: normal(std=0.02) weights, zero bias."""
    k1, k2 = jax.random.split(key)
    return {
        "w_attn": (0.02 * jax.random.normal(k1, (nx, 3 * nx))).astype(jnp.float32),
        "b_attn": jnp.zeros((3 * nx,), jnp.float32),
        "w_proj": (0.02 * jax.random.normal(k2, (nx, nx))).astype(jnp.float32),
        "b_proj": jnp.zeros((nx,), jnp.float32),
    }


if __name__ == "__main__":
    B, T, nx, n_head, n_ctx = 2, 8, 32, 4, 8
    scale = False  # matches the module's default __init__ argument

    key = jax.random.PRNGKey(0)
    kx, kp = jax.random.split(key)
    x = jax.random.normal(kx, (B, T, nx), dtype=jnp.float32)
    params = init_params(kp, nx)

    fwd = jax.jit(functools.partial(attention_forward, n_head=n_head,
                                    n_ctx=n_ctx, scale=scale))
    a, present = fwd(x, params)
    a = jax.block_until_ready(a)
    present = jax.block_until_ready(present)

    assert a.shape == (B, T, nx)
    assert present.shape == (2, B, n_head, T, nx // n_head)

    # plain-JAX f32 reference (tolerance covers bf16 intermediates / MXU operands)
    def ref_forward(x):
        qkv = x.reshape(-1, nx) @ params["w_attn"] + params["b_attn"]
        qkv = qkv.reshape(B, T, 3 * nx)
        q, k, v = jnp.split(qkv, 3, axis=2)
        Dh = nx // n_head
        q = q.reshape(B, T, n_head, Dh).transpose(0, 2, 1, 3)
        k = k.reshape(B, T, n_head, Dh).transpose(0, 2, 1, 3)
        v = v.reshape(B, T, n_head, Dh).transpose(0, 2, 1, 3)
        w = jnp.einsum("bhqd,bhkd->bhqk", q, k)
        if scale:
            w = w / math.sqrt(Dh)
        m = jnp.tril(jnp.ones((T, T)))
        w = w * m - 1e10 * (1 - m)
        w = jax.nn.softmax(w, axis=-1)
        o = jnp.einsum("bhqk,bhkd->bhqd", w, v)
        o = o.transpose(0, 2, 1, 3).reshape(B, T, nx)
        return (o.reshape(-1, nx) @ params["w_proj"] + params["b_proj"]).reshape(B, T, nx)

    ref = ref_forward(x)
    assert jnp.allclose(a, ref, atol=1e-2, rtol=1e-2), "mismatch vs reference"

    print("KERNEL_OK")
</pallas_src>

<mosaic_0001>
module attributes {stable_mosaic.version = 11 : i64} {
  func.func @_linear_kernel(%arg0: i32, %arg1: i32, %arg2: i32, %arg3: memref<16x32xbf16, #tpu.memory_space<vmem>>, %arg4: memref<32x96xbf16, #tpu.memory_space<vmem>>, %arg5: memref<1x96xf32, #tpu.memory_space<vmem>>, %arg6: memref<16x96xbf16, #tpu.memory_space<vmem>>, %arg7: memref<16x96xf32, #tpu.memory_space<vmem>>) attributes {dimension_semantics = [#tpu.dimension_semantics<parallel>, #tpu.dimension_semantics<parallel>, #tpu.dimension_semantics<arbitrary>], iteration_bounds = array<i64: 1, 1, 1>, scalar_prefetch = 0 : i64, scratch_operands = 1 : i64, tpu.core_type = #tpu.core_type<tc>, window_params = [{transform_indices = @transform_0, window_bounds = array<i64: 16, 32>}, {transform_indices = @transform_1, window_bounds = array<i64: 32, 96>}, {transform_indices = @transform_2, window_bounds = array<i64: 1, 96>}, {transform_indices = @transform_3, window_bounds = array<i64: 16, 96>}]} {
    %c0_i32 = arith.constant 0 : i32
    %0 = arith.cmpi eq, %arg2, %c0_i32 : i32
    %1 = arith.extui %0 : i1 to i32
    %c0_i32_0 = arith.constant 0 : i32
    %2 = arith.cmpi ne, %1, %c0_i32_0 : i32
    scf.if %2 {
      %cst_10 = arith.constant 0.000000e+00 : f32
      %12 = vector.broadcast %cst_10 : f32 to vector<16x96xf32>
      %c0_11 = arith.constant 0 : index
      %c0_12 = arith.constant 0 : index
      %13 = vector.load %arg7[%c0_11, %c0_12] : memref<16x96xf32, #tpu.memory_space<vmem>>, vector<16x96xf32>
      tpu.vector_store %arg7[%c0_11, %c0_12], %12 {strides = array<i32>} : memref<16x96xf32, #tpu.memory_space<vmem>>, vector<16x96xf32>,
    } else {
    }
    %c0 = arith.constant 0 : index
    %c0_1 = arith.constant 0 : index
    %3 = vector.load %arg7[%c0, %c0_1] : memref<16x96xf32, #tpu.memory_space<vmem>>, vector<16x96xf32>
    %c0_2 = arith.constant 0 : index
    %c0_3 = arith.constant 0 : index
    %4 = vector.load %arg3[%c0_2, %c0_3] : memref<16x32xbf16, #tpu.memory_space<vmem>>, vector<16x32xbf16>
    %c0_4 = arith.constant 0 : index
    %c0_5 = arith.constant 0 : index
    %5 = vector.load %arg4[%c0_4, %c0_5] : memref<32x96xbf16, #tpu.memory_space<vmem>>, vector<32x96xbf16>
    %cst = arith.constant dense<0.000000e+00> : vector<16x96xf32>
    %6 = tpu.matmul %4, %5, %cst {dimension_numbers = #tpu.dot_dimension_numbers<[1], [0], [0], [1], [0, 0, 1, 1], [], []>} : vector<16x32xbf16>, vector<32x96xbf16>, vector<16x96xf32> -> vector<16x96xf32>
    %7 = arith.addf %3, %6 : vector<16x96xf32>
    %c0_6 = arith.constant 0 : index
    %c0_7 = arith.constant 0 : index
    %8 = vector.load %arg7[%c0_6, %c0_7] : memref<16x96xf32, #tpu.memory_space<vmem>>, vector<16x96xf32>
    tpu.vector_store %arg7[%c0_6, %c0_7], %7 {strides = array<i32>} : memref<16x96xf32, #tpu.memory_space<vmem>>, vector<16x96xf32>,
    %c0_i32_8 = arith.constant 0 : i32
    %9 = arith.cmpi eq, %arg2, %c0_i32_8 : i32
    %10 = arith.extui %9 : i1 to i32
    %c0_i32_9 = arith.constant 0 : i32
    %11 = arith.cmpi ne, %10, %c0_i32_9 : i32
    scf.if %11 {
      %c0_10 = arith.constant 0 : index
      %c0_11 = arith.constant 0 : index
      %12 = vector.load %arg7[%c0_10, %c0_11] : memref<16x96xf32, #tpu.memory_space<vmem>>, vector<16x96xf32>
      %c0_12 = arith.constant 0 : index
      %c0_13 = arith.constant 0 : index
      %13 = vector.load %arg5[%c0_12, %c0_13] : memref<1x96xf32, #tpu.memory_space<vmem>>, vector<1x96xf32>
      %14 = vector.broadcast %13 : vector<1x96xf32> to vector<16x96xf32>
      %15 = arith.addf %12, %14 : vector<16x96xf32>
      %16 = arith.truncf %15 : vector<16x96xf32> to vector<16x96xbf16>
      %c0_14 = arith.constant 0 : index
      %c0_15 = arith.constant 0 : index
      %17 = vector.load %arg6[%c0_14, %c0_15] : memref<16x96xbf16, #tpu.memory_space<vmem>>, vector<16x96xbf16>
      tpu.vector_store %arg6[%c0_14, %c0_15], %16 {strides = array<i32>} : memref<16x96xbf16, #tpu.memory_space<vmem>>, vector<16x96xbf16>,
    } else {
    }
    return
  }
  func.func @transform_0(%arg0: i32, %arg1: i32, %arg2: i32) -> (i32, i32) {
    %c0_i32 = arith.constant 0 : i32
    return %arg0, %arg2 : i32, i32
  }
  func.func @transform_1(%arg0: i32, %arg1: i32, %arg2: i32) -> (i32, i32) {
    %c0_i32 = arith.constant 0 : i32
    return %arg2, %arg1 : i32, i32
  }
  func.func @transform_2(%arg0: i32, %arg1: i32, %arg2: i32) -> (i32, i32) {
    %c0_i32 = arith.constant 0 : i32
    %c0_i32_0 = arith.constant 0 : i32
    return %c0_i32, %arg1 : i32, i32
  }
  func.func @transform_3(%arg0: i32, %arg1: i32, %arg2: i32) -> (i32, i32) {
    %c0_i32 = arith.constant 0 : i32
    return %arg0, %arg1 : i32, i32
  }
}

module attributes {stable_mosaic.version = 11 : i64} {
  func.func @_attn_kernel(%arg0: i32, %arg1: i32, %arg2: i32, %arg3: i32, %arg4: memref<1x4x8x8xbf16, #tpu.memory_space<vmem>>, %arg5: memref<1x4x8x8xbf16, #tpu.memory_space<vmem>>, %arg6: memref<1x4x8x8xbf16, #tpu.memory_space<vmem>>, %arg7: memref<1x8x32xbf16, #tpu.memory_space<vmem>>, %arg8: memref<4x8x8xbf16, #tpu.memory_space<vmem>>, %arg9: memref<4x8x1xf32, #tpu.memory_space<vmem>>, %arg10: memref<4x8x1xf32, #tpu.memory_space<vmem>>, %arg11: memref<4x8x8xf32, #tpu.memory_space<vmem>>) attributes {dimension_semantics = [#tpu.dimension_semantics<parallel>, #tpu.dimension_semantics<parallel>, #tpu.dimension_semantics<parallel>, #tpu.dimension_semantics<arbitrary>], iteration_bounds = array<i64: 2, 1, 1, 1>, scalar_prefetch = 0 : i64, scratch_operands = 4 : i64, tpu.core_type = #tpu.core_type<tc>, window_params = [{transform_indices = @transform_0, window_bounds = array<i64: 1, 4, 8, 8>}, {transform_indices = @transform_1, window_bounds = array<i64: 1, 4, 8, 8>}, {transform_indices = @transform_2, window_bounds = array<i64: 1, 4, 8, 8>}, {transform_indices = @transform_3, window_bounds = array<i64: 1, 8, 32>}]} {
    %c8_i32 = arith.constant 8 : i32
    %0 = arith.muli %arg2, %c8_i32 : i32
    %c8_i32_0 = arith.constant 8 : i32
    %1 = arith.muli %arg3, %c8_i32_0 : i32
    %c0_i32 = arith.constant 0 : i32
    %2 = arith.cmpi eq, %arg3, %c0_i32 : i32
    %3 = arith.extui %2 : i1 to i32
    %c0_i32_1 = arith.constant 0 : i32
    %4 = arith.cmpi ne, %3, %c0_i32_1 : i32
    scf.if %4 {
      %cst = arith.constant 0xFF800000 : f32
      %20 = vector.broadcast %cst : f32 to vector<4x8x1xf32>
      %c0 = arith.constant 0 : index
      %c0_9 = arith.constant 0 : index
      %c0_10 = arith.constant 0 : index
      %21 = vector.load %arg9[%c0, %c0_9, %c0_10] : memref<4x8x1xf32, #tpu.memory_space<vmem>>, vector<4x8x1xf32>
      tpu.vector_store %arg9[%c0, %c0_9, %c0_10], %20 {strides = array<i32>} : memref<4x8x1xf32, #tpu.memory_space<vmem>>, vector<4x8x1xf32>,
      %cst_11 = arith.constant 0.000000e+00 : f32
      %22 = vector.broadcast %cst_11 : f32 to vector<4x8x1xf32>
      %c0_12 = arith.constant 0 : index
      %c0_13 = arith.constant 0 : index
      %c0_14 = arith.constant 0 : index
      %23 = vector.load %arg10[%c0_12, %c0_13, %c0_14] : memref<4x8x1xf32, #tpu.memory_space<vmem>>, vector<4x8x1xf32>
      tpu.vector_store %arg10[%c0_12, %c0_13, %c0_14], %22 {strides = array<i32>} : memref<4x8x1xf32, #tpu.memory_space<vmem>>, vector<4x8x1xf32>,
      %cst_15 = arith.constant 0.000000e+00 : f32
      %24 = vector.broadcast %cst_15 : f32 to vector<4x8x8xf32>
      %c0_16 = arith.constant 0 : index
      %c0_17 = arith.constant 0 : index
      %c0_18 = arith.constant 0 : index
      %25 = vector.load %arg11[%c0_16, %c0_17, %c0_18] : memref<4x8x8xf32, #tpu.memory_space<vmem>>, vector<4x8x8xf32>
      tpu.vector_store %arg11[%c0_16, %c0_17, %c0_18], %24 {strides = array<i32>} : memref<4x8x8xf32, #tpu.memory_space<vmem>>, vector<4x8x8xf32>,
      %c0_19 = arith.constant 0 : index
      %c0_20 = arith.constant 0 : index
      %c0_21 = arith.constant 0 : index
      %c0_22 = arith.constant 0 : index
      %26 = vector.load %arg4[%c0_19, %c0_20, %c0_21, %c0_22] : memref<1x4x8x8xbf16, #tpu.memory_space<vmem>>, vector<1x4x8x8xbf16>
      %27 = vector.shape_cast %26 : vector<1x4x8x8xbf16> to vector<4x8x8xbf16>
      %c0_23 = arith.constant 0 : index
      %c0_24 = arith.constant 0 : index
      %c0_25 = arith.constant 0 : index
      %28 = vector.load %arg8[%c0_23, %c0_24, %c0_25] : memref<4x8x8xbf16, #tpu.memory_space<vmem>>, vector<4x8x8xbf16>
      tpu.vector_store %arg8[%c0_23, %c0_24, %c0_25], %27 {strides = array<i32>} : memref<4x8x8xbf16, #tpu.memory_space<vmem>>, vector<4x8x8xbf16>,
    } else {
    }
    %c8_i32_2 = arith.constant 8 : i32
    %5 = arith.addi %1, %c8_i32_2 : i32
    %c1_i32 = arith.constant 1 : i32
    %6 = arith.subi %5, %c1_i32 : i32
    %7 = arith.cmpi sle, %6, %0 : i32
    %c8_i32_3 = arith.constant 8 : i32
    %8 = arith.addi %0, %c8_i32_3 : i32
    %c1_i32_4 = arith.constant 1 : i32
    %9 = arith.subi %8, %c1_i32_4 : i32
    %10 = arith.cmpi sle, %1, %9 : i32
    %true = arith.constant true
    %11 = arith.xori %7, %true : i1
    %12 = arith.andi %10, %11 : i1
    %13 = arith.extui %12 : i1 to i32
    %c0_i32_5 = arith.constant 0 : i32
    %14 = arith.cmpi ne, %13, %c0_i32_5 : i32
    scf.if %14 {
      %c0 = arith.constant 0 : index
      %c0_9 = arith.constant 0 : index
      %c0_10 = arith.constant 0 : index
      %c0_11 = arith.constant 0 : index
      %20 = vector.load %arg5[%c0, %c0_9, %c0_10, %c0_11] : memref<1x4x8x8xbf16, #tpu.memory_space<vmem>>, vector<1x4x8x8xbf16>
      %21 = vector.shape_cast %20 : vector<1x4x8x8xbf16> to vector<4x8x8xbf16>
      %c0_12 = arith.constant 0 : index
      %c0_13 = arith.constant 0 : index
      %c0_14 = arith.constant 0 : index
      %c0_15 = arith.constant 0 : index
      %22 = vector.load %arg6[%c0_12, %c0_13, %c0_14, %c0_15] : memref<1x4x8x8xbf16, #tpu.memory_space<vmem>>, vector<1x4x8x8xbf16>
      %23 = vector.shape_cast %22 : vector<1x4x8x8xbf16> to vector<4x8x8xbf16>
      %c0_16 = arith.constant 0 : index
      %c0_17 = arith.constant 0 : index
      %c0_18 = arith.constant 0 : index
      %24 = vector.load %arg8[%c0_16, %c0_17, %c0_18] : memref<4x8x8xbf16, #tpu.memory_space<vmem>>, vector<4x8x8xbf16>
      "tpu.trace_start"() <{level = 10 : i32, message = "hqd,hkd->hqk"}> : () -> ()
      %cst = arith.constant dense<0.000000e+00> : vector<4x8x8xf32>
      %25 = tpu.matmul %24, %21, %cst {dimension_numbers = #tpu.dot_dimension_numbers<[2], [2], [1], [1], [0, 0, 0, 1, 1, 1], [0], [0]>} : vector<4x8x8xbf16>, vector<4x8x8xbf16>, vector<4x8x8xf32> -> vector<4x8x8xf32>
      "tpu.trace_stop"() : () -> ()
      %26 = tpu.iota {dimensions = array<i32: 1>} : vector<4x8x8xi32>
      %27 = vector.broadcast %0 : i32 to vector<4x8x8xi32>
      %28 = arith.addi %26, %27 : vector<4x8x8xi32>
      %29 = tpu.iota {dimensions = array<i32: 2>} : vector<4x8x8xi32>
      %30 = vector.broadcast %1 : i32 to vector<4x8x8xi32>
      %31 = arith.addi %29, %30 : vector<4x8x8xi32>
      %32 = arith.cmpi sle, %31, %28 : vector<4x8x8xi32>
      %cst_19 = arith.constant -1.000000e+10 : f32
      %33 = vector.broadcast %cst_19 : f32 to vector<4x8x8xf32>
      %34 = arith.select %32, %25, %33 : vector<4x8x8xi1>, vector<4x8x8xf32>
      %c0_20 = arith.constant 0 : index
      %c0_21 = arith.constant 0 : index
      %c0_22 = arith.constant 0 : index
      %35 = vector.load %arg9[%c0_20, %c0_21, %c0_22] : memref<4x8x1xf32, #tpu.memory_space<vmem>>, vector<4x8x1xf32>
      %cst_23 = arith.constant dense<0xFF800000> : vector<4x8xf32>
      %36 = vector.multi_reduction <maximumf>, %34, %cst_23 [2] : vector<4x8x8xf32> to vector<4x8xf32>
      %37 = vector.shape_cast %36 : vector<4x8xf32> to vector<4x8x1xf32>
      %38 = arith.maximumf %35, %37 : vector<4x8x1xf32>
      %39 = arith.subf %35, %38 : vector<4x8x1xf32>
      %40 = math.exp %39 : vector<4x8x1xf32>
      %41 = vector.broadcast %38 : vector<4x8x1xf32> to vector<4x8x8xf32>
      %42 = arith.subf %34, %41 : vector<4x8x8xf32>
      %43 = math.exp %42 : vector<4x8x8xf32>
      %c0_24 = arith.constant 0 : index
      %c0_25 = arith.constant 0 : index
      %c0_26 = arith.constant 0 : index
      %44 = vector.load %arg10[%c0_24, %c0_25, %c0_26] : memref<4x8x1xf32, #tpu.memory_space<vmem>>, vector<4x8x1xf32>
      %45 = arith.mulf %40, %44 : vector<4x8x1xf32>
      %cst_27 = arith.constant dense<0.000000e+00> : vector<4x8xf32>
      %46 = vector.multi_reduction <add>, %43, %cst_27 [2] : vector<4x8x8xf32> to vector<4x8xf32>
      %47 = vector.shape_cast %46 : vector<4x8xf32> to vector<4x8x1xf32>
      %48 = arith.addf %45, %47 : vector<4x8x1xf32>
      %c0_28 = arith.constant 0 : index
      %c0_29 = arith.constant 0 : index
      %c0_30 = arith.constant 0 : index
      %49 = vector.load %arg10[%c0_28, %c0_29, %c0_30] : memref<4x8x1xf32, #tpu.memory_space<vmem>>, vector<4x8x1xf32>
      tpu.vector_store %arg10[%c0_28, %c0_29, %c0_30], %48 {strides = array<i32>} : memref<4x8x1xf32, #tpu.memory_space<vmem>>, vector<4x8x1xf32>,
      %c0_31 = arith.constant 0 : index
      %c0_32 = arith.constant 0 : index
      %c0_33 = arith.constant 0 : index
      %50 = vector.load %arg11[%c0_31, %c0_32, %c0_33] : memref<4x8x8xf32, #tpu.memory_space<vmem>>, vector<4x8x8xf32>
      %51 = vector.broadcast %40 : vector<4x8x1xf32> to vector<4x8x8xf32>
      %52 = arith.mulf %51, %50 : vector<4x8x8xf32>
      %53 = arith.truncf %43 : vector<4x8x8xf32> to vector<4x8x8xbf16>
      "tpu.trace_start"() <{level = 10 : i32, message = "hqk,hkd->hqd"}> : () -> ()
      %cst_34 = arith.constant dense<0.000000e+00> : vector<4x8x8xf32>
      %54 = tpu.matmul %53, %23, %cst_34 {dimension_numbers = #tpu.dot_dimension_numbers<[2], [1], [1], [2], [0, 0, 0, 1, 1, 2], [0], [0]>} : vector<4x8x8xbf16>, vector<4x8x8xbf16>, vector<4x8x8xf32> -> vector<4x8x8xf32>
      "tpu.trace_stop"() : () -> ()
      %55 = arith.addf %52, %54 : vector<4x8x8xf32>
      %c0_35 = arith.constant 0 : index
      %c0_36 = arith.constant 0 : index
      %c0_37 = arith.constant 0 : index
      %56 = vector.load %arg11[%c0_35, %c0_36, %c0_37] : memref<4x8x8xf32, #tpu.memory_space<vmem>>, vector<4x8x8xf32>
      tpu.vector_store %arg11[%c0_35, %c0_36, %c0_37], %55 {strides = array<i32>} : memref<4x8x8xf32, #tpu.memory_space<vmem>>, vector<4x8x8xf32>,
      %c0_38 = arith.constant 0 : index
      %c0_39 = arith.constant 0 : index
      %c0_40 = arith.constant 0 : index
      %57 = vector.load %arg9[%c0_38, %c0_39, %c0_40] : memref<4x8x1xf32, #tpu.memory_space<vmem>>, vector<4x8x1xf32>
      tpu.vector_store %arg9[%c0_38, %c0_39, %c0_40], %38 {strides = array<i32>} : memref<4x8x1xf32, #tpu.memory_space<vmem>>, vector<4x8x1xf32>,
    } else {
    }
    %15 = arith.extui %7 : i1 to i32
    %c0_i32_6 = arith.constant 0 : i32
    %16 = arith.cmpi ne, %15, %c0_i32_6 : i32
    scf.if %16 {
      %c0 = arith.constant 0 : index
      %c0_9 = arith.constant 0 : index
      %c0_10 = arith.constant 0 : index
      %c0_11 = arith.constant 0 : index
      %20 = vector.load %arg5[%c0, %c0_9, %c0_10, %c0_11] : memref<1x4x8x8xbf16, #tpu.memory_space<vmem>>, vector<1x4x8x8xbf16>
      %21 = vector.shape_cast %20 : vector<1x4x8x8xbf16> to vector<4x8x8xbf16>
      %c0_12 = arith.constant 0 : index
      %c0_13 = arith.constant 0 : index
      %c0_14 = arith.constant 0 : index
      %c0_15 = arith.constant 0 : index
      %22 = vector.load %arg6[%c0_12, %c0_13, %c0_14, %c0_15] : memref<1x4x8x8xbf16, #tpu.memory_space<vmem>>, vector<1x4x8x8xbf16>
      %23 = vector.shape_cast %22 : vector<1x4x8x8xbf16> to vector<4x8x8xbf16>
      %c0_16 = arith.constant 0 : index
      %c0_17 = arith.constant 0 : index
      %c0_18 = arith.constant 0 : index
      %24 = vector.load %arg8[%c0_16, %c0_17, %c0_18] : memref<4x8x8xbf16, #tpu.memory_space<vmem>>, vector<4x8x8xbf16>
      "tpu.trace_start"() <{level = 10 : i32, message = "hqd,hkd->hqk"}> : () -> ()
      %cst = arith.constant dense<0.000000e+00> : vector<4x8x8xf32>
      %25 = tpu.matmul %24, %21, %cst {dimension_numbers = #tpu.dot_dimension_numbers<[2], [2], [1], [1], [0, 0, 0, 1, 1, 1], [0], [0]>} : vector<4x8x8xbf16>, vector<4x8x8xbf16>, vector<4x8x8xf32> -> vector<4x8x8xf32>
      "tpu.trace_stop"() : () -> ()
      %c0_19 = arith.constant 0 : index
      %c0_20 = arith.constant 0 : index
      %c0_21 = arith.constant 0 : index
      %26 = vector.load %arg9[%c0_19, %c0_20, %c0_21] : memref<4x8x1xf32, #tpu.memory_space<vmem>>, vector<4x8x1xf32>
      %cst_22 = arith.constant dense<0xFF800000> : vector<4x8xf32>
      %27 = vector.multi_reduction <maximumf>, %25, %cst_22 [2] : vector<4x8x8xf32> to vector<4x8xf32>
      %28 = vector.shape_cast %27 : vector<4x8xf32> to vector<4x8x1xf32>
      %29 = arith.maximumf %26, %28 : vector<4x8x1xf32>
      %30 = arith.subf %26, %29 : vector<4x8x1xf32>
      %31 = math.exp %30 : vector<4x8x1xf32>
      %32 = vector.broadcast %29 : vector<4x8x1xf32> to vector<4x8x8xf32>
      %33 = arith.subf %25, %32 : vector<4x8x8xf32>
      %34 = math.exp %33 : vector<4x8x8xf32>
      %c0_23 = arith.constant 0 : index
      %c0_24 = arith.constant 0 : index
      %c0_25 = arith.constant 0 : index
      %35 = vector.load %arg10[%c0_23, %c0_24, %c0_25] : memref<4x8x1xf32, #tpu.memory_space<vmem>>, vector<4x8x1xf32>
      %36 = arith.mulf %31, %35 : vector<4x8x1xf32>
      %cst_26 = arith.constant dense<0.000000e+00> : vector<4x8xf32>
      %37 = vector.multi_reduction <add>, %34, %cst_26 [2] : vector<4x8x8xf32> to vector<4x8xf32>
      %38 = vector.shape_cast %37 : vector<4x8xf32> to vector<4x8x1xf32>
      %39 = arith.addf %36, %38 : vector<4x8x1xf32>
      %c0_27 = arith.constant 0 : index
      %c0_28 = arith.constant 0 : index
      %c0_29 = arith.constant 0 : index
      %40 = vector.load %arg10[%c0_27, %c0_28, %c0_29] : memref<4x8x1xf32, #tpu.memory_space<vmem>>, vector<4x8x1xf32>
      tpu.vector_store %arg10[%c0_27, %c0_28, %c0_29], %39 {strides = array<i32>} : memref<4x8x1xf32, #tpu.memory_space<vmem>>, vector<4x8x1xf32>,
      %c0_30 = arith.constant 0 : index
      %c0_31 = arith.constant 0 : index
      %c0_32 = arith.constant 0 : index
      %41 = vector.load %arg11[%c0_30, %c0_31, %c0_32] : memref<4x8x8xf32, #tpu.memory_space<vmem>>, vector<4x8x8xf32>
      %42 = vector.broadcast %31 : vector<4x8x1xf32> to vector<4x8x8xf32>
      %43 = arith.mulf %42, %41 : vector<4x8x8xf32>
      %44 = arith.truncf %34 : vector<4x8x8xf32> to vector<4x8x8xbf16>
      "tpu.trace_start"() <{level = 10 : i32, message = "hqk,hkd->hqd"}> : () -> ()
      %cst_33 = arith.constant dense<0.000000e+00> : vector<4x8x8xf32>
      %45 = tpu.matmul %44, %23, %cst_33 {dimension_numbers = #tpu.dot_dimension_numbers<[2], [1], [1], [2], [0, 0, 0, 1, 1, 2], [0], [0]>} : vector<4x8x8xbf16>, vector<4x8x8xbf16>, vector<4x8x8xf32> -> vector<4x8x8xf32>
      "tpu.trace_stop"() : () -> ()
      %46 = arith.addf %43, %45 : vector<4x8x8xf32>
      %c0_34 = arith.constant 0 : index
      %c0_35 = arith.constant 0 : index
      %c0_36 = arith.constant 0 : index
      %47 = vector.load %arg11[%c0_34, %c0_35, %c0_36] : memref<4x8x8xf32, #tpu.memory_space<vmem>>, vector<4x8x8xf32>
      tpu.vector_store %arg11[%c0_34, %c0_35, %c0_36], %46 {strides = array<i32>} : memref<4x8x8xf32, #tpu.memory_space<vmem>>, vector<4x8x8xf32>,
      %c0_37 = arith.constant 0 : index
      %c0_38 = arith.constant 0 : index
      %c0_39 = arith.constant 0 : index
      %48 = vector.load %arg9[%c0_37, %c0_38, %c0_39] : memref<4x8x1xf32, #tpu.memory_space<vmem>>, vector<4x8x1xf32>
      tpu.vector_store %arg9[%c0_37, %c0_38, %c0_39], %29 {strides = array<i32>} : memref<4x8x1xf32, #tpu.memory_space<vmem>>, vector<4x8x1xf32>,
    } else {
    }
    %c0_i32_7 = arith.constant 0 : i32
    %17 = arith.cmpi eq, %arg3, %c0_i32_7 : i32
    %18 = arith.extui %17 : i1 to i32
    %c0_i32_8 = arith.constant 0 : i32
    %19 = arith.cmpi ne, %18, %c0_i32_8 : i32
    scf.if %19 {
      %c0 = arith.constant 0 : index
      %c0_9 = arith.constant 0 : index
      %c0_10 = arith.constant 0 : index
      %20 = vector.load %arg10[%c0, %c0_9, %c0_10] : memref<4x8x1xf32, #tpu.memory_space<vmem>>, vector<4x8x1xf32>
      %21 = tpu.reciprocal %20 {approx = true} : vector<4x8x1xf32> -> vector<4x8x1xf32>
      %c0_11 = arith.constant 0 : index
      %c0_12 = arith.constant 0 : index
      %c0_13 = arith.constant 0 : index
      %22 = vector.load %arg11[%c0_11, %c0_12, %c0_13] : memref<4x8x8xf32, #tpu.memory_space<vmem>>, vector<1x8x8xf32>
      %23 = vector.shape_cast %22 : vector<1x8x8xf32> to vector<8x8xf32>
      %24 = vector.extract_strided_slice %21 {offsets = [0, 0, 0], sizes = [1, 8, 1], strides = [1, 1, 1]} : vector<4x8x1xf32> to vector<1x8x1xf32>
      %25 = vector.shape_cast %24 : vector<1x8x1xf32> to vector<8x1xf32>
      %26 = vector.broadcast %25 : vector<8x1xf32> to vector<8x8xf32>
      %27 = arith.mulf %23, %26 : vector<8x8xf32>
      %28 = arith.truncf %27 : vector<8x8xf32> to vector<8x8xbf16>
      %c0_14 = arith.constant 0 : index
      %c0_15 = arith.constant 0 : index
      %c0_16 = arith.constant 0 : index
      %29 = vector.load %arg7[%c0_14, %c0_15, %c0_16] : memref<1x8x32xbf16, #tpu.memory_space<vmem>>, vector<1x8x8xbf16>
      %30 = vector.shape_cast %29 : vector<1x8x8xbf16> to vector<8x8xbf16>
      %31 = vector.shape_cast %28 : vector<8x8xbf16> to vector<1x8x8xbf16>
      tpu.vector_store %arg7[%c0_14, %c0_15, %c0_16], %31 {strides = array<i32>} : memref<1x8x32xbf16, #tpu.memory_space<vmem>>, vector<1x8x8xbf16>,
      %c1 = arith.constant 1 : index
      %c0_17 = arith.constant 0 : index
      %c0_18 = arith.constant 0 : index
      %32 = vector.load %arg11[%c1, %c0_17, %c0_18] : memref<4x8x8xf32, #tpu.memory_space<vmem>>, vector<1x8x8xf32>
      %33 = vector.shape_cast %32 : vector<1x8x8xf32> to vector<8x8xf32>
      %34 = vector.extract_strided_slice %21 {offsets = [1, 0, 0], sizes = [1, 8, 1], strides = [1, 1, 1]} : vector<4x8x1xf32> to vector<1x8x1xf32>
      %35 = vector.shape_cast %34 : vector<1x8x1xf32> to vector<8x1xf32>
      %36 = vector.broadcast %35 : vector<8x1xf32> to vector<8x8xf32>
      %37 = arith.mulf %33, %36 : vector<8x8xf32>
      %38 = arith.truncf %37 : vector<8x8xf32> to vector<8x8xbf16>
      %c0_19 = arith.constant 0 : index
      %c0_20 = arith.constant 0 : index
      %c8 = arith.constant 8 : index
      %39 = vector.load %arg7[%c0_19, %c0_20, %c8] : memref<1x8x32xbf16, #tpu.memory_space<vmem>>, vector<1x8x8xbf16>
      %40 = vector.shape_cast %39 : vector<1x8x8xbf16> to vector<8x8xbf16>
      %41 = vector.shape_cast %38 : vector<8x8xbf16> to vector<1x8x8xbf16>
      tpu.vector_store %arg7[%c0_19, %c0_20, %c8], %41 {strides = array<i32>} : memref<1x8x32xbf16, #tpu.memory_space<vmem>>, vector<1x8x8xbf16>,
      %c2 = arith.constant 2 : index
      %c0_21 = arith.constant 0 : index
      %c0_22 = arith.constant 0 : index
      %42 = vector.load %arg11[%c2, %c0_21, %c0_22] : memref<4x8x8xf32, #tpu.memory_space<vmem>>, vector<1x8x8xf32>
      %43 = vector.shape_cast %42 : vector<1x8x8xf32> to vector<8x8xf32>
      %44 = vector.extract_strided_slice %21 {offsets = [2, 0, 0], sizes = [1, 8, 1], strides = [1, 1, 1]} : vector<4x8x1xf32> to vector<1x8x1xf32>
      %45 = vector.shape_cast %44 : vector<1x8x1xf32> to vector<8x1xf32>
      %46 = vector.broadcast %45 : vector<8x1xf32> to vector<8x8xf32>
      %47 = arith.mulf %43, %46 : vector<8x8xf32>
      %48 = arith.truncf %47 : vector<8x8xf32> to vector<8x8xbf16>
      %c0_23 = arith.constant 0 : index
      %c0_24 = arith.constant 0 : index
      %c16 = arith.constant 16 : index
      %49 = vector.load %arg7[%c0_23, %c0_24, %c16] : memref<1x8x32xbf16, #tpu.memory_space<vmem>>, vector<1x8x8xbf16>
      %50 = vector.shape_cast %49 : vector<1x8x8xbf16> to vector<8x8xbf16>
      %51 = vector.shape_cast %48 : vector<8x8xbf16> to vector<1x8x8xbf16>
      tpu.vector_store %arg7[%c0_23, %c0_24, %c16], %51 {strides = array<i32>} : memref<1x8x32xbf16, #tpu.memory_space<vmem>>, vector<1x8x8xbf16>,
      %c3 = arith.constant 3 : index
      %c0_25 = arith.constant 0 : index
      %c0_26 = arith.constant 0 : index
      %52 = vector.load %arg11[%c3, %c0_25, %c0_26] : memref<4x8x8xf32, #tpu.memory_space<vmem>>, vector<1x8x8xf32>
      %53 = vector.shape_cast %52 : vector<1x8x8xf32> to vector<8x8xf32>
      %54 = vector.extract_strided_slice %21 {offsets = [3, 0, 0], sizes = [1, 8, 1], strides = [1, 1, 1]} : vector<4x8x1xf32> to vector<1x8x1xf32>
      %55 = vector.shape_cast %54 : vector<1x8x1xf32> to vector<8x1xf32>
      %56 = vector.broadcast %55 : vector<8x1xf32> to vector<8x8xf32>
      %57 = arith.mulf %53, %56 : vector<8x8xf32>
      %58 = arith.truncf %57 : vector<8x8xf32> to vector<8x8xbf16>
      %c0_27 = arith.constant 0 : index
      %c0_28 = arith.constant 0 : index
      %c24 = arith.constant 24 : index
      %59 = vector.load %arg7[%c0_27, %c0_28, %c24] : memref<1x8x32xbf16, #tpu.memory_space<vmem>>, vector<1x8x8xbf16>
      %60 = vector.shape_cast %59 : vector<1x8x8xbf16> to vector<8x8xbf16>
      %61 = vector.shape_cast %58 : vector<8x8xbf16> to vector<1x8x8xbf16>
      tpu.vector_store %arg7[%c0_27, %c0_28, %c24], %61 {strides = array<i32>} : memref<1x8x32xbf16, #tpu.memory_space<vmem>>, vector<1x8x8xbf16>,
    } else {
    }
    return
  }
  func.func @transform_0(%arg0: i32, %arg1: i32, %arg2: i32, %arg3: i32) -> (i32, i32, i32, i32) {
    %c0_i32 = arith.constant 0 : i32
    %c0_i32_0 = arith.constant 0 : i32
    return %arg0, %arg1, %arg2, %c0_i32 : i32, i32, i32, i32
  }
  func.func @transform_1(%arg0: i32, %arg1: i32, %arg2: i32, %arg3: i32) -> (i32, i32, i32, i32) {
    %c0_i32 = arith.constant 0 : i32
    %c0_i32_0 = arith.constant 0 : i32
    return %arg0, %arg1, %arg3, %c0_i32 : i32, i32, i32, i32
  }
  func.func @transform_2(%arg0: i32, %arg1: i32, %arg2: i32, %arg3: i32) -> (i32, i32, i32, i32) {
    %c0_i32 = arith.constant 0 : i32
    %c0_i32_0 = arith.constant 0 : i32
    return %arg0, %arg1, %arg3, %c0_i32 : i32, i32, i32, i32
  }
  func.func @transform_3(%arg0: i32, %arg1: i32, %arg2: i32, %arg3: i32) -> (i32, i32, i32) {
    %c0_i32 = arith.constant 0 : i32
    return %arg0, %arg2, %arg1 : i32, i32, i32
  }
}

module attributes {stable_mosaic.version = 11 : i64} {
  func.func @_linear_kernel(%arg0: i32, %arg1: i32, %arg2: i32, %arg3: memref<16x32xbf16, #tpu.memory_space<vmem>>, %arg4: memref<32x32xbf16, #tpu.memory_space<vmem>>, %arg5: memref<1x32xf32, #tpu.memory_space<vmem>>, %arg6: memref<16x32xf32, #tpu.memory_space<vmem>>, %arg7: memref<16x32xf32, #tpu.memory_space<vmem>>) attributes {dimension_semantics = [#tpu.dimension_semantics<parallel>, #tpu.dimension_semantics<parallel>, #tpu.dimension_semantics<arbitrary>], iteration_bounds = array<i64: 1, 1, 1>, scalar_prefetch = 0 : i64, scratch_operands = 1 : i64, tpu.core_type = #tpu.core_type<tc>, window_params = [{transform_indices = @transform_0, window_bounds = array<i64: 16, 32>}, {transform_indices = @transform_1, window_bounds = array<i64: 32, 32>}, {transform_indices = @transform_2, window_bounds = array<i64: 1, 32>}, {transform_indices = @transform_3, window_bounds = array<i64: 16, 32>}]} {
    %c0_i32 = arith.constant 0 : i32
    %0 = arith.cmpi eq, %arg2, %c0_i32 : i32
    %1 = arith.extui %0 : i1 to i32
    %c0_i32_0 = arith.constant 0 : i32
    %2 = arith.cmpi ne, %1, %c0_i32_0 : i32
    scf.if %2 {
      %cst_10 = arith.constant 0.000000e+00 : f32
      %12 = vector.broadcast %cst_10 : f32 to vector<16x32xf32>
      %c0_11 = arith.constant 0 : index
      %c0_12 = arith.constant 0 : index
      %13 = vector.load %arg7[%c0_11, %c0_12] : memref<16x32xf32, #tpu.memory_space<vmem>>, vector<16x32xf32>
      tpu.vector_store %arg7[%c0_11, %c0_12], %12 {strides = array<i32>} : memref<16x32xf32, #tpu.memory_space<vmem>>, vector<16x32xf32>,
    } else {
    }
    %c0 = arith.constant 0 : index
    %c0_1 = arith.constant 0 : index
    %3 = vector.load %arg7[%c0, %c0_1] : memref<16x32xf32, #tpu.memory_space<vmem>>, vector<16x32xf32>
    %c0_2 = arith.constant 0 : index
    %c0_3 = arith.constant 0 : index
    %4 = vector.load %arg3[%c0_2, %c0_3] : memref<16x32xbf16, #tpu.memory_space<vmem>>, vector<16x32xbf16>
    %c0_4 = arith.constant 0 : index
    %c0_5 = arith.constant 0 : index
    %5 = vector.load %arg4[%c0_4, %c0_5] : memref<32x32xbf16, #tpu.memory_space<vmem>>, vector<32x32xbf16>
    %cst = arith.constant dense<0.000000e+00> : vector<16x32xf32>
    %6 = tpu.matmul %4, %5, %cst {dimension_numbers = #tpu.dot_dimension_numbers<[1], [0], [0], [1], [0, 0, 1, 1], [], []>} : vector<16x32xbf16>, vector<32x32xbf16>, vector<16x32xf32> -> vector<16x32xf32>
    %7 = arith.addf %3, %6 : vector<16x32xf32>
    %c0_6 = arith.constant 0 : index
    %c0_7 = arith.constant 0 : index
    %8 = vector.load %arg7[%c0_6, %c0_7] : memref<16x32xf32, #tpu.memory_space<vmem>>, vector<16x32xf32>
    tpu.vector_store %arg7[%c0_6, %c0_7], %7 {strides = array<i32>} : memref<16x32xf32, #tpu.memory_space<vmem>>, vector<16x32xf32>,
    %c0_i32_8 = arith.constant 0 : i32
    %9 = arith.cmpi eq, %arg2, %c0_i32_8 : i32
    %10 = arith.extui %9 : i1 to i32
    %c0_i32_9 = arith.constant 0 : i32
    %11 = arith.cmpi ne, %10, %c0_i32_9 : i32
    scf.if %11 {
      %c0_10 = arith.constant 0 : index
      %c0_11 = arith.constant 0 : index
      %12 = vector.load %arg7[%c0_10, %c0_11] : memref<16x32xf32, #tpu.memory_space<vmem>>, vector<16x32xf32>
      %c0_12 = arith.constant 0 : index
      %c0_13 = arith.constant 0 : index
      %13 = vector.load %arg5[%c0_12, %c0_13] : memref<1x32xf32, #tpu.memory_space<vmem>>, vector<1x32xf32>
      %14 = vector.broadcast %13 : vector<1x32xf32> to vector<16x32xf32>
      %15 = arith.addf %12, %14 : vector<16x32xf32>
      %c0_14 = arith.constant 0 : index
      %c0_15 = arith.constant 0 : index
      %16 = vector.load %arg6[%c0_14, %c0_15] : memref<16x32xf32, #tpu.memory_space<vmem>>, vector<16x32xf32>
      tpu.vector_store %arg6[%c0_14, %c0_15], %15 {strides = array<i32>} : memref<16x32xf32, #tpu.memory_space<vmem>>, vector<16x32xf32>,
    } else {
    }
    return
  }
  func.func @transform_0(%arg0: i32, %arg1: i32, %arg2: i32) -> (i32, i32) {
    %c0_i32 = arith.constant 0 : i32
    return %arg0, %arg2 : i32, i32
  }
  func.func @transform_1(%arg0: i32, %arg1: i32, %arg2: i32) -> (i32, i32) {
    %c0_i32 = arith.constant 0 : i32
    return %arg2, %arg1 : i32, i32
  }
  func.func @transform_2(%arg0: i32, %arg1: i32, %arg2: i32) -> (i32, i32) {
    %c0_i32 = arith.constant 0 : i32
    %c0_i32_0 = arith.constant 0 : i32
    return %c0_i32, %arg1 : i32, i32
  }
  func.func @transform_3(%arg0: i32, %arg1: i32, %arg2: i32) -> (i32, i32) {
    %c0_i32 = arith.constant 0 : i32
    return %arg0, %arg1 : i32, i32
  }
}

</mosaic_0001>

<llo_original>
// kernel: attention_forward.5
$region0: #{attention_forward.5}
  #allocation0 [shape = 'u32[]', space=smem, size = 0x4, offset = 0x4, fixed_abs, tag = 'smem constant byte address 0x4 - core index']
  #allocation1 [shape = 'u32[144,128]{1,0:T(1,128)}', space=vmem, size = 0x12000, scoped, tag = 'internal scratch']
  #allocation2 [shape = 'f32[16,32]{1,0:T(8,128)}', space=vmem, size = 0x2000, scoped, tag = 'scratch operand']
  %s0 = inlined_call_operand.vmem [shape: bf16[16,32], index: 0, kind: input, shape index: {}]
  %s1 = inlined_call_operand.vmem [shape: bf16[32,32], index: 1, kind: input, shape index: {}]
  %s2 = inlined_call_operand.vmem [shape: f32[1,32], index: 2, kind: input, shape index: {}]
  %s3 = inlined_call_operand.hbm [shape: f32[16,32], index: 3, kind: output, shape index: {}]
  %s4 = sld [smem:[#allocation0]]
  $region30: #{attention_forward.5} parent=0
    _
  %s6 = ssub.s32 1, %s4
  %s7 = scalar_select 0, %s6, %s4
  $region1: #{attention_forward.5} parent=0
    #allocation3 [shape = 'u8[8192]{0}', space=vmem, size = 0x2000, scoped, tag = 'output window, operand 0, single buffered']
    #allocation4 [shape = 's32[1]{0}', space=sflag, size = 0x4, scoped, tag = 'scoped memory for attention_forward.5']
    %8 = vsyncpa [#allocation4], 0
    // Predicated region
    $region2: #{attention_forward.5} parent=1 // pred_check
      _
    $region3: #{attention_forward.5} parent=1 // pred_check_branch
      %10 = sbr.rel (0) target = $region5
    $region4: #{attention_forward.5} parent=1 // pred_region
      _
    $region5: #{attention_forward.5} parent=1 // pred_fallthru
      _
    // Predicated region
    $region6: #{attention_forward.5} parent=1 // pred_check
      _
    $region7: #{attention_forward.5} parent=1 // pred_check_branch
      %12 = sbr.rel (0) target = $region9
    $region8: #{attention_forward.5} parent=1 // pred_region
      _
    $region9: #{attention_forward.5} parent=1 // pred_fallthru
      _
    // Predicated region
    $region10: #{attention_forward.5} parent=1 // pred_check
      _
    $region11: #{attention_forward.5} parent=1 // pred_check_branch
      %14 = sbr.rel (0) target = $region13
    $region12: #{attention_forward.5} parent=1 // pred_region
      _
    $region13: #{attention_forward.5} parent=1 // pred_fallthru
      _
    %p16 = scmp.eq.s32.totalorder 0, 0
    // Predicated region
    $region14: #{attention_forward.5} parent=1 // pred_check
      %p17 = pneg %p16
    $region15: #{attention_forward.5} parent=1 // pred_check_branch
      %19 = sbr.rel (%p17) target = $region17
    $region16: #{attention_forward.5} parent=1 // pred_region
      %vm20 = vcmask 261120
      %21 = vst.msk [vmem:[#allocation2] sm:$0xff] %vm20, 0.0
      %22 = vst.msk [vmem:[#allocation2 + $0x8] sm:$0xff] %vm20, 0.0
    $region17: #{attention_forward.5} parent=1 // pred_fallthru
      _
    %v23 = vld [vmem:[#allocation2] sm:$0xff]
    %v24 = vld [vmem:[#allocation2 + $0x8] sm:$0xff]
    %v25 = vld [vmem:[%s0] sm:$0xf]
    %v26 = vld [vmem:[%s0 + $0x4] sm:$0xf]
    %v27 = vld [vmem:[%s1] sm:$0xf]
    %v28 = vld [vmem:[%s1 + $0x4] sm:$0xf]
    %v29 = vld [vmem:[%s1 + $0x8] sm:$0xf]
    %v30 = vld [vmem:[%s1 + $0xc] sm:$0xf]
    %v33 = vunpack.c.l.b16 %v25
    %v34 = vunpack.c.l.b16 %v26
    %v35 = vpack.c.b16 %v34, %v33
    %v40 = vunpack.c.l.b16 %v27
    %v41 = vunpack.c.l.b16 %v28
    %v42 = vunpack.c.l.b16 %v29
    %v43 = vunpack.c.l.b16 %v30
    %v44 = vpack.c.b16 %v41, %v40
    %v45 = vpack.c.b16 %v43, %v42
    %vm48 = vcmask 261120
    %v50 = vsel %vm48, %v35, 0
    %52 = vmatprep.subr.bf16.mxu0 0
    %53 = vmatpush1.bf16.msra.mxu0 %v44
    %54 = vmatprep.subr.bf16.mxu0 0
    %55 = vmatpush1.bf16.msra.mxu0 %v45
    %56 = vmatprep.subr.bf16.mxu0 0
    %57 = vmatpush1.bf16.msra.mxu0 0
    %58 = vmatprep.subr.bf16.mxu0 0
    %59 = vmatpush1.bf16.msra.mxu0 0
    %60 = vmatprep.subr.bf16.mxu0 0
    %61 = vmatpush1.bf16.msra.mxu0 0
    %62 = vmatprep.subr.bf16.mxu0 0
    %63 = vmatpush1.bf16.msra.mxu0 0
    %64 = vmatprep.subr.bf16.mxu0 0
    %65 = vmatpush1.bf16.msra.mxu0 0
    %66 = vmatprep.subr.bf16.mxu0 0
    %67 = vmatpush1.bf16.msra.mxu0 0
    %68 = vmatprep.subr.bf16.mxu0 0
    %69 = vmatpush1.bf16.msra.mxu0 0
    %70 = vmatprep.subr.bf16.mxu0 0
    %71 = vmatpush1.bf16.msra.mxu0 0
    %72 = vmatprep.subr.bf16.mxu0 0
    %73 = vmatpush1.bf16.msra.mxu0 0
    %74 = vmatprep.subr.bf16.mxu0 0
    %75 = vmatpush1.bf16.msra.mxu0 0
    %76 = vmatprep.subr.bf16.mxu0 0
    %77 = vmatpush1.bf16.msra.mxu0 0
    %78 = vmatprep.subr.bf16.mxu0 0
    %79 = vmatpush1.bf16.msra.mxu0 0
    %80 = vmatprep.subr.bf16.mxu0 0
    %81 = vmatpush1.bf16.msra.mxu0 0
    %82 = vmatprep.subr.bf16.mxu0 0
    %83 = vmatpush1.bf16.msra.mxu0 0
    %84 = vmatprep.mubr.bf16.mxu0 0
    %85 = vmatmul.mubr.bf16.gmra.mrb[0].mxu0 %v50
    %v86 = vpop.f32.mrb[0].mxu0
    %v87 = vadd.f32 0.0, %v86
    %v88 = vpop.f32.mrb[0].mxu0
    %v89 = vpop.f32.mrb[0].mxu0
    %v90 = vadd.f32 0.0, %v89
    %v91 = vpop.f32.mrb[0].mxu0
    %92 = vdwg.mxu0
    %v93 = vadd.f32 %v23, %v87
    %v94 = vadd.f32 %v24, %v90
    %95 = vst.msk [vmem:[#allocation2] sm:$0xff] %vm48, %v93
    %96 = vst.msk [vmem:[#allocation2 + $0x8] sm:$0xff] %vm48, %v94
    // Predicated region
    $region18: #{attention_forward.5} parent=1 // pred_check
      %p97 = pneg %p16
    $region19: #{attention_forward.5} parent=1 // pred_check_branch
      %99 = sbr.rel (%p97) target = $region21
    $region20: #{attention_forward.5} parent=1 // pred_region
      %v100 = vld [vmem:[#allocation2] sm:$0xff]
      %v101 = vld [vmem:[#allocation2 + $0x8] sm:$0xff]
      %v102 = vld [vmem:[%s2] sm:$0x1]
      %v104 = vlaneseq
      %v105 = vshrl.u32 %v104, 7
      %v106 = vsub.s32 0, %v105
      %v107 = vrot.slane %v102, %v106
      %v109 = vadd.f32 %v100, %v107
      %v110 = vadd.f32 %v101, %v107
      %111 = vst.msk [vmem:[#allocation3] sm:$0xff] %vm48, %v109
      %112 = vst.msk [vmem:[#allocation3 + $0x8] sm:$0xff] %vm48, %v110
    $region21: #{attention_forward.5} parent=1 // pred_fallthru
      _
    // Predicated region
    $region22: #{attention_forward.5} parent=1 // pred_check
      _
    $region23: #{attention_forward.5} parent=1 // pred_check_branch
      %114 = sbr.rel (0) target = $region25
    $region24: #{attention_forward.5} parent=1 // pred_region
      %s116 = ssub.s32 256, 256
      %117 = vsyncadd [#allocation4], %s116
      %s118 = sshll.u32 [#allocation3], 4
      %s119 = int_to_ptr.vmem [resolvable:$true] %s118
      %124 = dma.vmem_to_hbm [thread:$0]  %s119, 256, %s3, [#allocation4], 128, 128, 8
    $region25: #{attention_forward.5} parent=1 // pred_fallthru
      _
    // Predicated region
    $region26: #{attention_forward.5} parent=1 // pred_check
      _
    $region27: #{attention_forward.5} parent=1 // pred_check_branch
      %126 = sbr.rel (0) target = $region29
    $region28: #{attention_forward.5} parent=1 // pred_region
      %127 = dma.done [#allocation4], 256
    $region29: #{attention_forward.5} parent=1 // pred_fallthru
      _
    %128 = vsyncpa [#allocation4], 1

// kernel: attention_forward.3
$region0: #{attention_forward.3}
  #allocation0 [shape = 'u32[]', space=smem, size = 0x4, offset = 0x4, fixed_abs, tag = 'smem constant byte address 0x4 - core index']
  #allocation1 [shape = 'u32[144,128]{1,0:T(1,128)}', space=vmem, size = 0x12000, scoped, tag = 'internal scratch']
  #allocation2 [shape = 'f32[16,96]{1,0:T(8,128)}', space=vmem, size = 0x2000, scoped, tag = 'scratch operand']
  %s0 = inlined_call_operand.vmem [shape: bf16[16,32], index: 0, kind: input, shape index: {}]
  %s1 = inlined_call_operand.vmem [shape: bf16[32,96], index: 1, kind: input, shape index: {}]
  %s2 = inlined_call_operand.vmem [shape: f32[1,96], index: 2, kind: input, shape index: {}]
  %s3 = inlined_call_operand.vmem [shape: bf16[16,96], index: 3, kind: output, shape index: {}]
  %s4 = sld [smem:[#allocation0]]
  $region30: #{attention_forward.3} parent=0
    _
  %s6 = ssub.s32 1, %s4
  %s7 = scalar_select 0, %s6, %s4
  // Predicated region
  $region2: #{attention_forward.3} parent=0 // pred_check
    _
  $region3: #{attention_forward.3} parent=0 // pred_check_branch
    %9 = sbr.rel (0) target = $region5
  $region4: #{attention_forward.3} parent=0 // pred_region
    _
  $region5: #{attention_forward.3} parent=0 // pred_fallthru
    _
  // Predicated region
  $region6: #{attention_forward.3} parent=0 // pred_check
    _
  $region7: #{attention_forward.3} parent=0 // pred_check_branch
    %11 = sbr.rel (0) target = $region9
  $region8: #{attention_forward.3} parent=0 // pred_region
    _
  $region9: #{attention_forward.3} parent=0 // pred_fallthru
    _
  // Predicated region
  $region10: #{attention_forward.3} parent=0 // pred_check
    _
  $region11: #{attention_forward.3} parent=0 // pred_check_branch
    %13 = sbr.rel (0) target = $region13
  $region12: #{attention_forward.3} parent=0 // pred_region
    _
  $region13: #{attention_forward.3} parent=0 // pred_fallthru
    _
  %p15 = scmp.eq.s32.totalorder 0, 0
  // Predicated region
  $region14: #{attention_forward.3} parent=0 // pred_check
    %p16 = pneg %p15
  $region15: #{attention_forward.3} parent=0 // pred_check_branch
    %18 = sbr.rel (%p16) target = $region17
  $region16: #{attention_forward.3} parent=0 // pred_region
    %vm19 = vcmask 785408
    %20 = vst.msk [vmem:[#allocation2] sm:$0xff] %vm19, 0.0
    %21 = vst.msk [vmem:[#allocation2 + $0x8] sm:$0xff] %vm19, 0.0
  $region17: #{attention_forward.3} parent=0 // pred_fallthru
    _
  %v22 = vld [vmem:[#allocation2] sm:$0xff]
  %v23 = vld [vmem:[#allocation2 + $0x8] sm:$0xff]
  %v24 = vld [vmem:[%s0] sm:$0xf]
  %v25 = vld [vmem:[%s0 + $0x4] sm:$0xf]
  %v26 = vld [vmem:[%s1] sm:$0xf]
  %v27 = vld [vmem:[%s1 + $0x4] sm:$0xf]
  %v28 = vld [vmem:[%s1 + $0x8] sm:$0xf]
  %v29 = vld [vmem:[%s1 + $0xc] sm:$0xf]
  %v32 = vunpack.c.l.b16 %v24
  %v33 = vunpack.c.l.b16 %v25
  %v34 = vpack.c.b16 %v33, %v32
  %v39 = vunpack.c.l.b16 %v26
  %v40 = vunpack.c.l.b16 %v27
  %v41 = vunpack.c.l.b16 %v28
  %v42 = vunpack.c.l.b16 %v29
  %v43 = vpack.c.b16 %v40, %v39
  %v44 = vpack.c.b16 %v42, %v41
  %vm47 = vcmask 261120
  %v49 = vsel %vm47, %v34, 0
  %51 = vmatprep.subr.bf16.mxu0 0
  %52 = vmatpush1.bf16.msra.mxu0 %v43
  %53 = vmatprep.subr.bf16.mxu0 0
  %54 = vmatpush1.bf16.msra.mxu0 %v44
  %55 = vmatprep.subr.bf16.mxu0 0
  %56 = vmatpush1.bf16.msra.mxu0 0
  %57 = vmatprep.subr.bf16.mxu0 0
  %58 = vmatpush1.bf16.msra.mxu0 0
  %59 = vmatprep.subr.bf16.mxu0 0
  %60 = vmatpush1.bf16.msra.mxu0 0
  %61 = vmatprep.subr.bf16.mxu0 0
  %62 = vmatpush1.bf16.msra.mxu0 0
  %63 = vmatprep.subr.bf16.mxu0 0
  %64 = vmatpush1.bf16.msra.mxu0 0
  %65 = vmatprep.subr.bf16.mxu0 0
  %66 = vmatpush1.bf16.msra.mxu0 0
  %67 = vmatprep.subr.bf16.mxu0 0
  %68 = vmatpush1.bf16.msra.mxu0 0
  %69 = vmatprep.subr.bf16.mxu0 0
  %70 = vmatpush1.bf16.msra.mxu0 0
  %71 = vmatprep.subr.bf16.mxu0 0
  %72 = vmatpush1.bf16.msra.mxu0 0
  %73 = vmatprep.subr.bf16.mxu0 0
  %74 = vmatpush1.bf16.msra.mxu0 0
  %75 = vmatprep.subr.bf16.mxu0 0
  %76 = vmatpush1.bf16.msra.mxu0 0
  %77 = vmatprep.subr.bf16.mxu0 0
  %78 = vmatpush1.bf16.msra.mxu0 0
  %79 = vmatprep.subr.bf16.mxu0 0
  %80 = vmatpush1.bf16.msra.mxu0 0
  %81 = vmatprep.subr.bf16.mxu0 0
  %82 = vmatpush1.bf16.msra.mxu0 0
  %83 = vmatprep.mubr.bf16.mxu0 0
  %84 = vmatmul.mubr.bf16.gmra.mrb[0].mxu0 %v49
  %v85 = vpop.f32.mrb[0].mxu0
  %v86 = vadd.f32 0.0, %v85
  %v87 = vpop.f32.mrb[0].mxu0
  %v88 = vpop.f32.mrb[0].mxu0
  %v89 = vadd.f32 0.0, %v88
  %v90 = vpop.f32.mrb[0].mxu0
  %91 = vdwg.mxu0
  %v92 = vadd.f32 %v22, %v86
  %v93 = vadd.f32 %v23, %v89
  %vm94 = vcmask 785408
  %95 = vst.msk [vmem:[#allocation2] sm:$0xff] %vm94, %v92
  %96 = vst.msk [vmem:[#allocation2 + $0x8] sm:$0xff] %vm94, %v93
  // Predicated region
  $region18: #{attention_forward.3} parent=0 // pred_check
    %p97 = pneg %p15
  $region19: #{attention_forward.3} parent=0 // pred_check_branch
    %99 = sbr.rel (%p97) target = $region21
  $region20: #{attention_forward.3} parent=0 // pred_region
    %v100 = vld [vmem:[#allocation2] sm:$0xff]
    %v101 = vld [vmem:[#allocation2 + $0x8] sm:$0xff]
    %v102 = vld [vmem:[%s2] sm:$0x1]
    %v104 = vlaneseq
    %v105 = vshrl.u32 %v104, 7
    %v106 = vsub.s32 0, %v105
    %v107 = vrot.slane %v102, %v106
    %v109 = vadd.f32 %v100, %v107
    %v110 = vadd.f32 %v101, %v107
    %v111 = vpack.c.bf16 %v110, %v109
    %v113 = vunpack.c.l.b16 %v111
    %v114 = vunpack.c.h.b16 %v111
    %v115 = vpack.c.b16 %v113, %v113
    %v116 = vpack.c.b16 %v114, %v114
    %vm119 = vcmask 781312
    %120 = vst.msk [vmem:[%s3] sm:$0xf] %vm119, %v115
    %121 = vst.msk [vmem:[%s3 + $0x4] sm:$0xf] %vm119, %v116
  $region21: #{attention_forward.3} parent=0 // pred_fallthru
    _
  // Predicated region
  $region22: #{attention_forward.3} parent=0 // pred_check
    _
  $region23: #{attention_forward.3} parent=0 // pred_check_branch
    %123 = sbr.rel (0) target = $region25
  $region24: #{attention_forward.3} parent=0 // pred_region
    _
  $region25: #{attention_forward.3} parent=0 // pred_fallthru
    _
  // Predicated region
  $region26: #{attention_forward.3} parent=0 // pred_check
    _
  $region27: #{attention_forward.3} parent=0 // pred_check_branch
    %125 = sbr.rel (0) target = $region29
  $region28: #{attention_forward.3} parent=0 // pred_region
    _
  $region29: #{attention_forward.3} parent=0 // pred_fallthru
    _

// kernel: attention_forward.4
$region0: #{attention_forward.4}
  #allocation0 [shape = 'u32[]', space=smem, size = 0x4, offset = 0x4, fixed_abs, tag = 'smem constant byte address 0x4 - core index']
  #allocation1 [shape = 'u32[144,128]{1,0:T(1,128)}', space=vmem, size = 0x12000, scoped, tag = 'internal scratch']
  #allocation2 [shape = 'bf16[4,8,8]{2,1,0:T(8,128)(2,1)}', space=vmem, size = 0x2000, scoped, tag = 'scratch operand']
  #allocation3 [shape = 'f32[4,8,1]{2,1,0:T(8,128)}', space=vmem, size = 0x4000, scoped, tag = 'scratch operand']
  #allocation4 [shape = 'f32[4,8,1]{2,1,0:T(8,128)}', space=vmem, size = 0x4000, scoped, tag = 'scratch operand']
  #allocation5 [shape = 'f32[4,8,8]{2,1,0:T(8,128)}', space=vmem, size = 0x4000, scoped, tag = 'scratch operand']
  %s0 = inlined_call_operand.vmem [shape: bf16[2,4,8,8], index: 0, kind: input, shape index: {}]
  %s1 = inlined_call_operand.vmem [shape: bf16[2,4,8,8], index: 1, kind: input, shape index: {}]
  %s2 = inlined_call_operand.vmem [shape: bf16[2,4,8,8], index: 2, kind: input, shape index: {}]
  %s3 = inlined_call_operand.vmem [shape: bf16[2,8,32], index: 3, kind: output, shape index: {}]
  %s4 = sld [smem:[#allocation0]]
  $region61: #{attention_forward.4} parent=0
    _
  %s6 = ssub.s32 1, %s4
  %s7 = scalar_select 0, %s6, %s4
  loop: start=0, step=1, limit=4
  $region2: #{attention_forward.4} parent=0 // loop_pre_header
    _
  $region3: #{attention_forward.4} parent=0 // loop_header
    %s9 = sphi 0, %s13
    %p10 = scmp.ge.s32.totalorder %s9, 4
    %s16 = sphi 0, %s42
    %s17 = sphi 0, %s38
    %s18 = sphi 0, %s34
    %s19 = sphi 0, %s30
    %s20 = sphi 0, %s16
    %s21 = sphi 0, %s17
    %s22 = sphi 0, %s18
    %s23 = sphi 0, %s19
    %s24 = sphi 0, %s20
    %s25 = sphi 0, %s21
    %s26 = sphi 0, %s22
    %s27 = sphi 0, %s23
    %s49 = sphi 0, %s51
    %s52 = sphi 0, %s49
    %s53 = sphi 0, %s52
    %s69 = sphi 0, %s53
    %s79 = sphi 0, %s81
    %s82 = sphi 0, %s79
    %s83 = sphi 0, %s82
    %s99 = sphi 0, %s83
    %s109 = sphi 0, %s111
    %s112 = sphi 0, %s109
    %s113 = sphi 0, %s112
    %s129 = sphi 0, %s113
    %s139 = sphi 0, %s141
    %s142 = sphi 0, %s139
    %s143 = sphi 0, %s142
    %s159 = sphi 0, %s143
  $region4: #{attention_forward.4} parent=0 // loop_header_branch
    %12 = sbr.rel (%p10) target = $region8
  $region5: #{attention_forward.4} parent=0 // loop_body
    %s14 = ssub.s32 %s9, 1
    %s15 = ssub.s32 %s9, 2
    %s28 = sadd.s32 1, %s19
    %p29 = scmp.ge.s32.totalorder %s28, 1
    %s30 = scalar_select %p29, 0, %s28
    %s31 = sadd.s32 1, %s18
    %s32 = scalar_select %p29, %s31, %s18
    %p33 = scmp.ge.s32.totalorder %s32, 1
    %s34 = scalar_select %p33, 0, %s32
    %s35 = sadd.s32 1, %s17
    %s36 = scalar_select %p33, %s35, %s17
    %p37 = scmp.ge.s32.totalorder %s36, 1
    %s38 = scalar_select %p37, 0, %s36
    %s39 = sadd.s32 1, %s16
    %s40 = scalar_select %p37, %s39, %s16
    %p41 = scmp.ge.s32.totalorder %s40, 2
    %s42 = scalar_select %p41, 0, %s40
    %s43 = ssub.s32 %s16, %s42
    %s44 = ssub.s32 %s17, %s38
    %s45 = sor.u32 %s43, %s44
    %s46 = ssub.s32 %s18, %s34
    %s47 = sor.u32 %s45, %s46
    %p48 = scmp.eq.s32.totalorder %s47, 0
    %s50 = sadd.s32 %s49, 1
    %s51 = scalar_select %p48, %s49, %s50
    %p54 = pneg %p48
    %p55 = scmp.eq.s32.totalorder %s9, 1
    %p56 = por %p54, %p55
    %p57 = scmp.ne.s32.totalorder %s49, %s52
    %p58 = scmp.eq.s32.totalorder %s9, 0
    %p59 = por %p57, %p58
    %p60 = scmp.ne.s32.totalorder %s49, %s52
    %p61 = scmp.eq.s32.totalorder %s14, 1
    %p62 = por %p60, %p61
    %p63 = scmp.ne.s32.totalorder %s52, %s53
    %p64 = scmp.eq.s32.totalorder %s14, 0
    %p65 = por %p63, %p64
    %p66 = scmp.ne.s32.totalorder %s52, %s53
    %p67 = scmp.eq.s32.totalorder %s15, 1
    %p68 = por %p66, %p67
    %p70 = scmp.ne.s32.totalorder %s53, %s69
    %p71 = scmp.eq.s32.totalorder %s15, 0
    %p72 = por %p70, %p71
    %s73 = ssub.s32 %s16, %s42
    %s74 = ssub.s32 %s17, %s38
    %s75 = sor.u32 %s73, %s74
    %s76 = ssub.s32 %s19, %s30
    %s77 = sor.u32 %s75, %s76
    %p78 = scmp.eq.s32.totalorder %s77, 0
    %s80 = sadd.s32 %s79, 1
    %s81 = scalar_select %p78, %s79, %s80
    %p84 = pneg %p78
    %p85 = scmp.eq.s32.totalorder %s9, 1
    %p86 = por %p84, %p85
    %p87 = scmp.ne.s32.totalorder %s79, %s82
    %p88 = scmp.eq.s32.totalorder %s9, 0
    %p89 = por %p87, %p88
    %p90 = scmp.ne.s32.totalorder %s79, %s82
    %p91 = scmp.eq.s32.totalorder %s14, 1
    %p92 = por %p90, %p91
    %p93 = scmp.ne.s32.totalorder %s82, %s83
    %p94 = scmp.eq.s32.totalorder %s14, 0
    %p95 = por %p93, %p94
    %p96 = scmp.ne.s32.totalorder %s82, %s83
    %p97 = scmp.eq.s32.totalorder %s15, 1
    %p98 = por %p96, %p97
    %p100 = scmp.ne.s32.totalorder %s83, %s99
    %p101 = scmp.eq.s32.totalorder %s15, 0
    %p102 = por %p100, %p101
    %s103 = ssub.s32 %s16, %s42
    %s104 = ssub.s32 %s17, %s38
    %s105 = sor.u32 %s103, %s104
    %s106 = ssub.s32 %s19, %s30
    %s107 = sor.u32 %s105, %s106
    %p108 = scmp.eq.s32.totalorder %s107, 0
    %s110 = sadd.s32 %s109, 1
    %s111 = scalar_select %p108, %s109, %s110
    %p114 = pneg %p108
    %p115 = scmp.eq.s32.totalorder %s9, 1
    %p116 = por %p114, %p115
    %p117 = scmp.ne.s32.totalorder %s109, %s112
    %p118 = scmp.eq.s32.totalorder %s9, 0
    %p119 = por %p117, %p118
    %p120 = scmp.ne.s32.totalorder %s109, %s112
    %p121 = scmp.eq.s32.totalorder %s14, 1
    %p122 = por %p120, %p121
    %p123 = scmp.ne.s32.totalorder %s112, %s113
    %p124 = scmp.eq.s32.totalorder %s14, 0
    %p125 = por %p123, %p124
    %p126 = scmp.ne.s32.totalorder %s112, %s113
    %p127 = scmp.eq.s32.totalorder %s15, 1
    %p128 = por %p126, %p127
    %p130 = scmp.ne.s32.totalorder %s113, %s129
    %p131 = scmp.eq.s32.totalorder %s15, 0
    %p132 = por %p130, %p131
    %s133 = ssub.s32 %s16, %s42
    %s134 = ssub.s32 %s18, %s34
    %s135 = sor.u32 %s133, %s134
    %s136 = ssub.s32 %s17, %s38
    %s137 = sor.u32 %s135, %s136
    %p138 = scmp.eq.s32.totalorder %s137, 0
    %s140 = sadd.s32 %s139, 1
    %s141 = scalar_select %p138, %s139, %s140
    %p144 = pneg %p138
    %p145 = scmp.eq.s32.totalorder %s9, 1
    %p146 = por %p144, %p145
    %p147 = scmp.ne.s32.totalorder %s139, %s142
    %p148 = scmp.eq.s32.totalorder %s9, 0
    %p149 = por %p147, %p148
    %p150 = scmp.ne.s32.totalorder %s139, %s142
    %p151 = scmp.eq.s32.totalorder %s14, 1
    %p152 = por %p150, %p151
    %p153 = scmp.ne.s32.totalorder %s142, %s143
    %p154 = scmp.eq.s32.totalorder %s14, 0
    %p155 = por %p153, %p154
    %p156 = scmp.ne.s32.totalorder %s142, %s143
    %p157 = scmp.eq.s32.totalorder %s15, 1
    %p158 = por %p156, %p157
    %p160 = scmp.ne.s32.totalorder %s143, %s159
    %p161 = scmp.eq.s32.totalorder %s15, 0
    %p162 = por %p160, %p161
    %p163 = scmp.le.s32.totalorder 1, %s9
    %p164 = scmp.lt.s32.totalorder %s9, 3
    %p165 = pnand %p163, %p164
    %p166 = pneg %p165
    // Predicated region
    $region9: #{attention_forward.4} parent=5 // pred_check
      _
    $region10: #{attention_forward.4} parent=5 // pred_check_branch
      %168 = sbr.rel (%p165) target = $region12
    $region11: #{attention_forward.4} parent=5 // pred_region
      %s169 = ssub.s32 %s9, 1
    $region12: #{attention_forward.4} parent=5 // pred_fallthru
      _
    %p170 = scmp.lt.s32.totalorder %s9, 2
    // Predicated region
    $region13: #{attention_forward.4} parent=5 // pred_check
      %p171 = pneg %p170
    $region14: #{attention_forward.4} parent=5 // pred_check_branch
      %173 = sbr.rel (%p171) target = $region16
    $region15: #{attention_forward.4} parent=5 // pred_region
      // Predicated region
      $region17: #{attention_forward.4} parent=15 // pred_check
        %p174 = pneg %p59
      $region18: #{attention_forward.4} parent=15 // pred_check_branch
        %176 = sbr.rel (%p174) target = $region20
      $region19: #{attention_forward.4} parent=15 // pred_region
        %s177 = smul.u32 4, %s17
        %p178 = scmp.lt.s32.totalorder %s16, 1
        %s179 = scalar_select %p178, %s16, 1
        %p180 = scmp.lt.s32.totalorder %s177, 3
        %s181 = scalar_select %p180, %s177, 3
        %p182 = scmp.lt.s32.totalorder %s18, 0
        %s183 = scalar_select %p182, %s18, 0
        %s184 = sadd.s32 %s183, %s181
        %s185 = smul.addr %s179, 4
        %s186 = sadd.s32 %s184, %s185
        %s187 = smul.addr %s186, 4
        %s188 = scalar_lea.vmem %s0, %s187
        %s189 = smul.u32 4, %s17
      $region20: #{attention_forward.4} parent=15 // pred_fallthru
        _
      // Predicated region
      $region21: #{attention_forward.4} parent=15 // pred_check
        %p190 = pneg %p89
      $region22: #{attention_forward.4} parent=15 // pred_check_branch
        %192 = sbr.rel (%p190) target = $region24
      $region23: #{attention_forward.4} parent=15 // pred_region
        %s193 = smul.u32 4, %s17
        %p194 = scmp.lt.s32.totalorder %s16, 1
        %s195 = scalar_select %p194, %s16, 1
        %p196 = scmp.lt.s32.totalorder %s193, 3
        %s197 = scalar_select %p196, %s193, 3
        %p198 = scmp.lt.s32.totalorder %s19, 0
        %s199 = scalar_select %p198, %s19, 0
        %s200 = sadd.s32 %s199, %s197
        %s201 = smul.addr %s195, 4
        %s202 = sadd.s32 %s200, %s201
        %s203 = smul.addr %s202, 4
        %s204 = scalar_lea.vmem %s1, %s203
        %s205 = smul.u32 4, %s17
      $region24: #{attention_forward.4} parent=15 // pred_fallthru
        _
      // Predicated region
      $region25: #{attention_forward.4} parent=15 // pred_check
        %p206 = pneg %p119
      $region26: #{attention_forward.4} parent=15 // pred_check_branch
        %208 = sbr.rel (%p206) target = $region28
      $region27: #{attention_forward.4} parent=15 // pred_region
        %s209 = smul.u32 4, %s17
        %p210 = scmp.lt.s32.totalorder %s16, 1
        %s211 = scalar_select %p210, %s16, 1
        %p212 = scmp.lt.s32.totalorder %s209, 3
        %s213 = scalar_select %p212, %s209, 3
        %p214 = scmp.lt.s32.totalorder %s19, 0
        %s215 = scalar_select %p214, %s19, 0
        %s216 = sadd.s32 %s215, %s213
        %s217 = smul.addr %s211, 4
        %s218 = sadd.s32 %s216, %s217
        %s219 = smul.addr %s218, 4
        %s220 = scalar_lea.vmem %s2, %s219
        %s221 = smul.u32 4, %s17
      $region28: #{attention_forward.4} parent=15 // pred_fallthru
        _
    $region16: #{attention_forward.4} parent=5 // pred_fallthru
      _
    %p222 = scmp.le.s32.totalorder 1, %s9
    %p223 = scmp.lt.s32.totalorder %s9, 3
    %p224 = pnand %p222, %p223
    %p225 = pneg %p224
    // Predicated region
    $region29: #{attention_forward.4} parent=5 // pred_check
      _
    $region30: #{attention_forward.4} parent=5 // pred_check_branch
      %227 = sbr.rel (%p224) target = $region32
    $region31: #{attention_forward.4} parent=5 // pred_region
      %s228 = ssub.s32 %s9, 1
      %s229 = smul.u32 4, %s21
      %p230 = scmp.lt.s32.totalorder %s20, 1
      %s231 = scalar_select %p230, %s20, 1
      %p232 = scmp.lt.s32.totalorder %s229, 3
      %s233 = scalar_select %p232, %s229, 3
      %p234 = scmp.lt.s32.totalorder %s22, 0
      %s235 = scalar_select %p234, %s22, 0
      %s236 = sadd.s32 %s235, %s233
      %s237 = smul.addr %s231, 4
      %s238 = sadd.s32 %s236, %s237
      %s239 = smul.addr %s238, 4
      %s240 = scalar_lea.vmem %s0, %s239
      %p241 = pneg %p65
      %p242 = pneg %p62
      %s243 = smul.u32 4, %s21
      %p244 = scmp.lt.s32.totalorder %s20, 1
      %s245 = scalar_select %p244, %s20, 1
      %p246 = scmp.lt.s32.totalorder %s243, 3
      %s247 = scalar_select %p246, %s243, 3
      %p248 = scmp.lt.s32.totalorder %s23, 0
      %s249 = scalar_select %p248, %s23, 0
      %s250 = sadd.s32 %s249, %s247
      %s251 = smul.addr %s245, 4
      %s252 = sadd.s32 %s250, %s251
      %s253 = smul.addr %s252, 4
      %s254 = scalar_lea.vmem %s1, %s253
      %p255 = pneg %p95
      %p256 = pneg %p92
      %s257 = smul.u32 4, %s21
      %p258 = scmp.lt.s32.totalorder %s20, 1
      %s259 = scalar_select %p258, %s20, 1
      %p260 = scmp.lt.s32.totalorder %s257, 3
      %s261 = scalar_select %p260, %s257, 3
      %p262 = scmp.lt.s32.totalorder %s23, 0
      %s263 = scalar_select %p262, %s23, 0
      %s264 = sadd.s32 %s263, %s261
      %s265 = smul.addr %s259, 4
      %s266 = sadd.s32 %s264, %s265
      %s267 = smul.addr %s266, 4
      %s268 = scalar_lea.vmem %s2, %s267
      %p269 = pneg %p125
      %p270 = pneg %p122
      %p271 = pneg %p155
      %p272 = pneg %p152
      %p273 = scmp.lt.s32.totalorder %s20, 1
      %s274 = scalar_select %p273, %s20, 1
      %p275 = scmp.lt.s32.totalorder %s22, 0
      %s276 = scalar_select %p275, %s22, 0
      %p277 = scmp.lt.s32.totalorder %s21, 0
      %s278 = scalar_select %p277, %s21, 0
      %s279 = sadd.s32 %s278, %s276
      %s280 = sadd.s32 %s279, %s274
      %s281 = smul.addr %s280, 4
      %s282 = scalar_lea.vmem %s3, %s281
      %s283 = smul.u32 4, %s21
      %p284 = scmp.lt.s32.totalorder %s20, 1
      %s285 = scalar_select %p284, %s20, 1
      %p286 = scmp.lt.s32.totalorder %s283, 3
      %s287 = scalar_select %p286, %s283, 3
      %p288 = scmp.lt.s32.totalorder %s22, 0
      %s289 = scalar_select %p288, %s22, 0
      %s290 = sadd.s32 %s289, %s287
      %s291 = smul.addr %s285, 4
      %s292 = sadd.s32 %s290, %s291
      %s293 = smul.addr %s292, 4
      %s294 = scalar_lea.vmem %s0, %s293
      %s295 = smul.u32 4, %s21
      %s296 = smul.u32 4, %s21
      %p297 = scmp.lt.s32.totalorder %s20, 1
      %s298 = scalar_select %p297, %s20, 1
      %p299 = scmp.lt.s32.totalorder %s296, 3
      %s300 = scalar_select %p299, %s296, 3
      %p301 = scmp.lt.s32.totalorder %s23, 0
      %s302 = scalar_select %p301, %s23, 0
      %s303 = sadd.s32 %s302, %s300
      %s304 = smul.addr %s298, 4
      %s305 = sadd.s32 %s303, %s304
      %s306 = smul.addr %s305, 4
      %s307 = scalar_lea.vmem %s1, %s306
      %s308 = smul.u32 4, %s21
      %s309 = smul.u32 4, %s21
      %p310 = scmp.lt.s32.totalorder %s20, 1
      %s311 = scalar_select %p310, %s20, 1
      %p312 = scmp.lt.s32.totalorder %s309, 3
      %s313 = scalar_select %p312, %s309, 3
      %p314 = scmp.lt.s32.totalorder %s23, 0
      %s315 = scalar_select %p314, %s23, 0
      %s316 = sadd.s32 %s315, %s313
      %s317 = smul.addr %s311, 4
      %s318 = sadd.s32 %s316, %s317
      %s319 = smul.addr %s318, 4
      %s320 = scalar_lea.vmem %s2, %s319
      %s321 = smul.u32 4, %s21
      %p322 = scmp.lt.s32.totalorder %s20, 1
      %s323 = scalar_select %p322, %s20, 1
      %p324 = scmp.lt.s32.totalorder %s22, 0
      %s325 = scalar_select %p324, %s22, 0
      %p326 = scmp.lt.s32.totalorder %s21, 0
      %s327 = scalar_select %p326, %s21, 0
      %s328 = sadd.s32 %s327, %s325
      %s329 = sadd.s32 %s328, %s323
      %s330 = smul.addr %s329, 4
      %s331 = scalar_lea.vmem %s3, %s330
      %s333 = smul.u32 %s22, 8
      %s334 = smul.u32 %s23, 8
      %p335 = scmp.eq.s32.totalorder %s23, 0
      // Predicated region
      $region33: #{attention_forward.4} parent=31 // pred_check
        %p336 = pneg %p335
      $region34: #{attention_forward.4} parent=31 // pred_check_branch
        %338 = sbr.rel (%p336) target = $region36
      $region35: #{attention_forward.4} parent=31 // pred_region
        %vm339 = vcmask 7168
        %340 = vst.msk [vmem:[#allocation3] sm:$0xff] %vm339, -inf
        %341 = vst.msk [vmem:[#allocation3 + $0x8] sm:$0xff] %vm339, -inf
        %342 = vst.msk [vmem:[#allocation3 + $0x10] sm:$0xff] %vm339, -inf
        %343 = vst.msk [vmem:[#allocation3 + $0x18] sm:$0xff] %vm339, -inf
        %344 = vst.msk [vmem:[#allocation4] sm:$0xff] %vm339, 0.0
        %345 = vst.msk [vmem:[#allocation4 + $0x8] sm:$0xff] %vm339, 0.0
        %346 = vst.msk [vmem:[#allocation4 + $0x10] sm:$0xff] %vm339, 0.0
        %347 = vst.msk [vmem:[#allocation4 + $0x18] sm:$0xff] %vm339, 0.0
        %vm348 = vcmask 64512
        %349 = vst.msk [vmem:[#allocation5] sm:$0xff] %vm348, 0.0
        %350 = vst.msk [vmem:[#allocation5 + $0x8] sm:$0xff] %vm348, 0.0
        %351 = vst.msk [vmem:[#allocation5 + $0x10] sm:$0xff] %vm348, 0.0
        %352 = vst.msk [vmem:[#allocation5 + $0x18] sm:$0xff] %vm348, 0.0
        %v353 = vld [vmem:[%s294] sm:$0xf]
        %v354 = vld [vmem:[%s294 + $0x4] sm:$0xf]
        %v355 = vld [vmem:[%s294 + $0x8] sm:$0xf]
        %v356 = vld [vmem:[%s294 + $0xc] sm:$0xf]
        %vm357 = vcmask 60416
        %358 = vst.msk [vmem:[#allocation2] sm:$0xf] %vm357, %v353
        %359 = vst.msk [vmem:[#allocation2 + $0x4] sm:$0xf] %vm357, %v354
        %360 = vst.msk [vmem:[#allocation2 + $0x8] sm:$0xf] %vm357, %v355
        %361 = vst.msk [vmem:[#allocation2 + $0xc] sm:$0xf] %vm357, %v356
      $region36: #{attention_forward.4} parent=31 // pred_fallthru
        _
      %s362 = sadd.s32 %s334, 7
      %p363 = scmp.le.s32.totalorder %s362, %s333
      %s364 = sadd.s32 %s333, 7
      %p365 = scmp.le.s32.totalorder %s334, %s364
      %p366 = scmp.gt.s32.totalorder %s362, %s333
      %p367 = pnand %p365, %p366
      %p368 = pneg %p367
      // Predicated region
      $region37: #{attention_forward.4} parent=31 // pred_check
        _
      $region38: #{attention_forward.4} parent=31 // pred_check_branch
        %370 = sbr.rel (%p367) target = $region40
      $region39: #{attention_forward.4} parent=31 // pred_region
        %v371 = vld [vmem:[%s307] sm:$0xf]
        %v372 = vld [vmem:[%s307 + $0x4] sm:$0xf]
        %v373 = vld [vmem:[%s307 + $0x8] sm:$0xf]
        %v374 = vld [vmem:[%s307 + $0xc] sm:$0xf]
        %v375 = vld [vmem:[%s320] sm:$0xf]
        %v376 = vld [vmem:[%s320 + $0x4] sm:$0xf]
        %v377 = vld [vmem:[%s320 + $0x8] sm:$0xf]
        %v378 = vld [vmem:[%s320 + $0xc] sm:$0xf]
        %v379 = vld [vmem:[#allocation2] sm:$0xf]
        %v380 = vld [vmem:[#allocation2 + $0x4] sm:$0xf]
        %v381 = vld [vmem:[#allocation2 + $0x8] sm:$0xf]
        %v382 = vld [vmem:[#allocation2 + $0xc] sm:$0xf]
        %vm383 = vcmask 64512
        %v385 = vsel %vm383, %v379, 0
        %v388 = vsel %vm383, %v371, 0
        %390 = vmatprep.subr.bf16.mxu0 0
        %391 = vmatpush1.bf16.xpose.msra.mxu0 %v388
        %392 = vmatprep.subr.bf16.mxu0 0
        %393 = vmatpush1.bf16.xpose.msra.mxu0 0
        %394 = vmatprep.subr.bf16.mxu0 0
        %395 = vmatpush1.bf16.xpose.msra.mxu0 0
        %396 = vmatprep.subr.bf16.mxu0 0
        %397 = vmatpush1.bf16.xpose.msra.mxu0 0
        %398 = vmatprep.subr.bf16.mxu0 0
        %399 = vmatpush1.bf16.xpose.msra.mxu0 0
        %400 = vmatprep.subr.bf16.mxu0 0
        %401 = vmatpush1.bf16.xpose.msra.mxu0 0
        %402 = vmatprep.subr.bf16.mxu0 0
        %403 = vmatpush1.bf16.xpose.msra.mxu0 0
        %404 = vmatprep.subr.bf16.mxu0 0
        %405 = vmatpush1.bf16.xpose.msra.mxu0 0
        %406 = vmatprep.subr.bf16.mxu0 0
        %407 = vmatpush1.bf16.xpose.msra.mxu0 0
        %408 = vmatprep.subr.bf16.mxu0 0
        %409 = vmatpush1.bf16.xpose.msra.mxu0 0
        %410 = vmatprep.subr.bf16.mxu0 0
        %411 = vmatpush1.bf16.xpose.msra.mxu0 0
        %412 = vmatprep.subr.bf16.mxu0 0
        %413 = vmatpush1.bf16.xpose.msra.mxu0 0
        %414 = vmatprep.subr.bf16.mxu0 0
        %415 = vmatpush1.bf16.xpose.msra.mxu0 0
        %416 = vmatprep.subr.bf16.mxu0 0
        %417 = vmatpush1.bf16.xpose.msra.mxu0 0
        %418 = vmatprep.subr.bf16.mxu0 0
        %419 = vmatpush1.bf16.xpose.msra.mxu0 0
        %420 = vmatprep.subr.bf16.mxu0 0
        %421 = vmatpush1.bf16.xpose.msra.mxu0 0
        %422 = vmatprep.mubr.bf16.mxu0 0
        %423 = vmatmul.mubr.bf16.gmra.mrb[0].mxu0 %v385
        %v424 = vpop.f32.mrb[0].mxu0
        %v425 = vadd.f32 0.0, %v424
        %v426 = vpop.f32.mrb[0].mxu0
        %v427 = vpop.f32.mrb[0].mxu0
        %v428 = vpop.f32.mrb[0].mxu0
        %429 = vdwg.mxu0
        %v431 = vsel %vm383, %v380, 0
        %v434 = vsel %vm383, %v372, 0
        %436 = vmatprep.subr.bf16.mxu0 0
        %437 = vmatpush1.bf16.xpose.msra.mxu0 %v434
        %438 = vmatprep.subr.bf16.mxu0 0
        %439 = vmatpush1.bf16.xpose.msra.mxu0 0
        %440 = vmatprep.subr.bf16.mxu0 0
        %441 = vmatpush1.bf16.xpose.msra.mxu0 0
        %442 = vmatprep.subr.bf16.mxu0 0
        %443 = vmatpush1.bf16.xpose.msra.mxu0 0
        %444 = vmatprep.subr.bf16.mxu0 0
        %445 = vmatpush1.bf16.xpose.msra.mxu0 0
        %446 = vmatprep.subr.bf16.mxu0 0
        %447 = vmatpush1.bf16.xpose.msra.mxu0 0
        %448 = vmatprep.subr.bf16.mxu0 0
        %449 = vmatpush1.bf16.xpose.msra.mxu0 0
        %450 = vmatprep.subr.bf16.mxu0 0
        %451 = vmatpush1.bf16.xpose.msra.mxu0 0
        %452 = vmatprep.subr.bf16.mxu0 0
        %453 = vmatpush1.bf16.xpose.msra.mxu0 0
        %454 = vmatprep.subr.bf16.mxu0 0
        %455 = vmatpush1.bf16.xpose.msra.mxu0 0
        %456 = vmatprep.subr.bf16.mxu0 0
        %457 = vmatpush1.bf16.xpose.msra.mxu0 0
        %458 = vmatprep.subr.bf16.mxu0 0
        %459 = vmatpush1.bf16.xpose.msra.mxu0 0
        %460 = vmatprep.subr.bf16.mxu0 0
        %461 = vmatpush1.bf16.xpose.msra.mxu0 0
        %462 = vmatprep.subr.bf16.mxu0 0
        %463 = vmatpush1.bf16.xpose.msra.mxu0 0
        %464 = vmatprep.subr.bf16.mxu0 0
        %465 = vmatpush1.bf16.xpose.msra.mxu0 0
        %466 = vmatprep.subr.bf16.mxu0 0
        %467 = vmatpush1.bf16.xpose.msra.mxu0 0
        %468 = vmatprep.mubr.bf16.mxu0 0
        %469 = vmatmul.mubr.bf16.gmra.mrb[0].mxu0 %v431
        %v470 = vpop.f32.mrb[0].mxu0
        %v471 = vadd.f32 0.0, %v470
        %v472 = vpop.f32.mrb[0].mxu0
        %v473 = vpop.f32.mrb[0].mxu0
        %v474 = vpop.f32.mrb[0].mxu0
        %475 = vdwg.mxu0
        %v477 = vsel %vm383, %v381, 0
        %v480 = vsel %vm383, %v373, 0
        %482 = vmatprep.subr.bf16.mxu0 0
        %483 = vmatpush1.bf16.xpose.msra.mxu0 %v480
        %484 = vmatprep.subr.bf16.mxu0 0
        %485 = vmatpush1.bf16.xpose.msra.mxu0 0
        %486 = vmatprep.subr.bf16.mxu0 0
        %487 = vmatpush1.bf16.xpose.msra.mxu0 0
        %488 = vmatprep.subr.bf16.mxu0 0
        %489 = vmatpush1.bf16.xpose.msra.mxu0 0
        %490 = vmatprep.subr.bf16.mxu0 0
        %491 = vmatpush1.bf16.xpose.msra.mxu0 0
        %492 = vmatprep.subr.bf16.mxu0 0
        %493 = vmatpush1.bf16.xpose.msra.mxu0 0
        %494 = vmatprep.subr.bf16.mxu0 0
        %495 = vmatpush1.bf16.xpose.msra.mxu0 0
        %496 = vmatprep.subr.bf16.mxu0 0
        %497 = vmatpush1.bf16.xpose.msra.mxu0 0
        %498 = vmatprep.subr.bf16.mxu0 0
        %499 = vmatpush1.bf16.xpose.msra.mxu0 0
        %500 = vmatprep.subr.bf16.mxu0 0
        %501 = vmatpush1.bf16.xpose.msra.mxu0 0
        %502 = vmatprep.subr.bf16.mxu0 0
        %503 = vmatpush1.bf16.xpose.msra.mxu0 0
        %504 = vmatprep.subr.bf16.mxu0 0
        %505 = vmatpush1.bf16.xpose.msra.mxu0 0
        %506 = vmatprep.subr.bf16.mxu0 0
        %507 = vmatpush1.bf16.xpose.msra.mxu0 0
        %508 = vmatprep.subr.bf16.mxu0 0
        %509 = vmatpush1.bf16.xpose.msra.mxu0 0
        %510 = vmatprep.subr.bf16.mxu0 0
        %511 = vmatpush1.bf16.xpose.msra.mxu0 0
        %512 = vmatprep.subr.bf16.mxu0 0
        %513 = vmatpush1.bf16.xpose.msra.mxu0 0
        %514 = vmatprep.mubr.bf16.mxu0 0
        %515 = vmatmul.mubr.bf16.gmra.mrb[0].mxu0 %v477
        %v516 = vpop.f32.mrb[0].mxu0
        %v517 = vadd.f32 0.0, %v516
        %v518 = vpop.f32.mrb[0].mxu0
        %v519 = vpop.f32.mrb[0].mxu0
        %v520 = vpop.f32.mrb[0].mxu0
        %521 = vdwg.mxu0
        %v523 = vsel %vm383, %v382, 0
        %v526 = vsel %vm383, %v374, 0
        %528 = vmatprep.subr.bf16.mxu0 0
        %529 = vmatpush1.bf16.xpose.msra.mxu0 %v526
        %530 = vmatprep.subr.bf16.mxu0 0
        %531 = vmatpush1.bf16.xpose.msra.mxu0 0
        %532 = vmatprep.subr.bf16.mxu0 0
        %533 = vmatpush1.bf16.xpose.msra.mxu0 0
        %534 = vmatprep.subr.bf16.mxu0 0
        %535 = vmatpush1.bf16.xpose.msra.mxu0 0
        %536 = vmatprep.subr.bf16.mxu0 0
        %537 = vmatpush1.bf16.xpose.msra.mxu0 0
        %538 = vmatprep.subr.bf16.mxu0 0
        %539 = vmatpush1.bf16.xpose.msra.mxu0 0
        %540 = vmatprep.subr.bf16.mxu0 0
        %541 = vmatpush1.bf16.xpose.msra.mxu0 0
        %542 = vmatprep.subr.bf16.mxu0 0
        %543 = vmatpush1.bf16.xpose.msra.mxu0 0
        %544 = vmatprep.subr.bf16.mxu0 0
        %545 = vmatpush1.bf16.xpose.msra.mxu0 0
        %546 = vmatprep.subr.bf16.mxu0 0
        %547 = vmatpush1.bf16.xpose.msra.mxu0 0
        %548 = vmatprep.subr.bf16.mxu0 0
        %549 = vmatpush1.bf16.xpose.msra.mxu0 0
        %550 = vmatprep.subr.bf16.mxu0 0
        %551 = vmatpush1.bf16.xpose.msra.mxu0 0
        %552 = vmatprep.subr.bf16.mxu0 0
        %553 = vmatpush1.bf16.xpose.msra.mxu0 0
        %554 = vmatprep.subr.bf16.mxu0 0
        %555 = vmatpush1.bf16.xpose.msra.mxu0 0
        %556 = vmatprep.subr.bf16.mxu0 0
        %557 = vmatpush1.bf16.xpose.msra.mxu0 0
        %558 = vmatprep.subr.bf16.mxu0 0
        %559 = vmatpush1.bf16.xpose.msra.mxu0 0
        %560 = vmatprep.mubr.bf16.mxu0 0
        %561 = vmatmul.mubr.bf16.gmra.mrb[0].mxu0 %v523
        %v562 = vpop.f32.mrb[0].mxu0
        %v563 = vadd.f32 0.0, %v562
        %v564 = vpop.f32.mrb[0].mxu0
        %v565 = vpop.f32.mrb[0].mxu0
        %v566 = vpop.f32.mrb[0].mxu0
        %567 = vdwg.mxu0
        %v568 = vlaneseq
        %v569 = vshrl.u32 %v568, 7
        %v570 = vstv %s333
        %v571 = vadd.s32 %v569, %v570
        %v572 = vlaneseq
        %v573 = vand.u32 %v572, 127
        %v574 = vstv %s334
        %v575 = vadd.s32 %v573, %v574
        %vm576 = vcmp.le.s32.totalorder %v575, %v571
        %v577 = vsel %vm576, %v425, -1e+10
        %v578 = vsel %vm576, %v471, -1e+10
        %v579 = vsel %vm576, %v517, -1e+10
        %v580 = vsel %vm576, %v563, -1e+10
        %v581 = vld [vmem:[#allocation3] sm:$0xff]
        %v582 = vld [vmem:[#allocation3 + $0x8] sm:$0xff]
        %v583 = vld [vmem:[#allocation3 + $0x10] sm:$0xff]
        %v584 = vld [vmem:[#allocation3 + $0x18] sm:$0xff]
        %v585 = vsel %vm383, %v577, -inf
        %586 = vmax.xlane.f32.xlu0 %v585
        %v587 = vpop.xlane.xlu0 %586
        %v588 = vsel %vm383, %v578, -inf
        %589 = vmax.xlane.f32.xlu0 %v588
        %v590 = vpop.xlane.xlu0 %589
        %v591 = vsel %vm383, %v579, -inf
        %592 = vmax.xlane.f32.xlu0 %v591
        %v593 = vpop.xlane.xlu0 %592
        %v594 = vsel %vm383, %v580, -inf
        %595 = vmax.xlane.f32.xlu0 %v594
        %v596 = vpop.xlane.xlu0 %595
        %v597 = vmax.f32 %v581, %v587
        %v598 = vmax.f32 %v582, %v590
        %v599 = vmax.f32 %v583, %v593
        %v600 = vmax.f32 %v584, %v596
        %v601 = vsub.f32 %v581, %v597
        %v602 = vsub.f32 %v582, %v598
        %v603 = vsub.f32 %v583, %v599
        %v604 = vsub.f32 %v584, %v600
        %v605 = vmul.f32 %v601, 1.442695
        %v606 = vpow.pop %v605
        %v607 = vmul.f32 %v602, 1.442695
        %v608 = vpow.pop %v607
        %v609 = vmul.f32 %v603, 1.442695
        %v610 = vpow.pop %v609
        %v611 = vmul.f32 %v604, 1.442695
        %v612 = vpow.pop %v611
        %614 = vset.pattern.permute.xlu0 0
        %615 = vperm.xlu0 %614, %v597
        %v616 = vpop.permute.xlu0 %615
        %619 = vset.pattern.permute.xlu0 0
        %620 = vperm.xlu0 %619, %v598
        %v621 = vpop.permute.xlu0 %620
        %624 = vset.pattern.permute.xlu0 0
        %625 = vperm.xlu0 %624, %v599
        %v626 = vpop.permute.xlu0 %625
        %629 = vset.pattern.permute.xlu0 0
        %630 = vperm.xlu0 %629, %v600
        %v631 = vpop.permute.xlu0 %630
        %v633 = vsub.f32 %v577, %v616
        %v634 = vsub.f32 %v578, %v621
        %v635 = vsub.f32 %v579, %v626
        %v636 = vsub.f32 %v580, %v631
        %v637 = vmul.f32 %v633, 1.442695
        %v638 = vpow.pop %v637
        %v639 = vmul.f32 %v634, 1.442695
        %v640 = vpow.pop %v639
        %v641 = vmul.f32 %v635, 1.442695
        %v642 = vpow.pop %v641
        %v643 = vmul.f32 %v636, 1.442695
        %v644 = vpow.pop %v643
        %v645 = vld [vmem:[#allocation4] sm:$0xff]
        %v646 = vld [vmem:[#allocation4 + $0x8] sm:$0xff]
        %v647 = vld [vmem:[#allocation4 + $0x10] sm:$0xff]
        %v648 = vld [vmem:[#allocation4 + $0x18] sm:$0xff]
        %v649 = vmul.f32 %v606, %v645
        %v650 = vmul.f32 %v608, %v646
        %v651 = vmul.f32 %v610, %v647
        %v652 = vmul.f32 %v612, %v648
        %v653 = vsel %vm383, %v638, 0.0
        %654 = vadd.xlane.f32.xlu0 %v653
        %v655 = vpop.xlane.xlu0 %654
        %v656 = vsel %vm383, %v640, 0.0
        %657 = vadd.xlane.f32.xlu0 %v656
        %v658 = vpop.xlane.xlu0 %657
        %v659 = vsel %vm383, %v642, 0.0
        %660 = vadd.xlane.f32.xlu0 %v659
        %v661 = vpop.xlane.xlu0 %660
        %v662 = vsel %vm383, %v644, 0.0
        %663 = vadd.xlane.f32.xlu0 %v662
        %v664 = vpop.xlane.xlu0 %663
        %v665 = vadd.f32 %v649, %v655
        %v666 = vadd.f32 %v650, %v658
        %v667 = vadd.f32 %v651, %v661
        %v668 = vadd.f32 %v652, %v664
        %vm669 = vcmask 7168
        %670 = vst.msk [vmem:[#allocation4] sm:$0xff] %vm669, %v665
        %671 = vst.msk [vmem:[#allocation4 + $0x8] sm:$0xff] %vm669, %v666
        %672 = vst.msk [vmem:[#allocation4 + $0x10] sm:$0xff] %vm669, %v667
        %673 = vst.msk [vmem:[#allocation4 + $0x18] sm:$0xff] %vm669, %v668
        %v674 = vld [vmem:[#allocation5] sm:$0xff]
        %v675 = vld [vmem:[#allocation5 + $0x8] sm:$0xff]
        %v676 = vld [vmem:[#allocation5 + $0x10] sm:$0xff]
        %v677 = vld [vmem:[#allocation5 + $0x18] sm:$0xff]
        %679 = vset.pattern.permute.xlu0 0
        %680 = vperm.xlu0 %679, %v606
        %v681 = vpop.permute.xlu0 %680
        %684 = vset.pattern.permute.xlu0 0
        %685 = vperm.xlu0 %684, %v608
        %v686 = vpop.permute.xlu0 %685
        %689 = vset.pattern.permute.xlu0 0
        %690 = vperm.xlu0 %689, %v610
        %v691 = vpop.permute.xlu0 %690
        %694 = vset.pattern.permute.xlu0 0
        %695 = vperm.xlu0 %694, %v612
        %v696 = vpop.permute.xlu0 %695
        %v698 = vmul.f32 %v681, %v674
        %v699 = vmul.f32 %v686, %v675
        %v700 = vmul.f32 %v691, %v676
        %v701 = vmul.f32 %v696, %v677
        %v702 = vpack.c.bf16 %v638, %v638
        %v703 = vpack.c.bf16 %v640, %v640
        %v704 = vpack.c.bf16 %v642, %v642
        %v705 = vpack.c.bf16 %v644, %v644
        %v707 = vsel %vm383, %v702, 0
        %vm709 = vcmask 1043456
        %v711 = vsel %vm709, %v375, 0
        %713 = vmatprep.subr.bf16.mxu0 0
        %714 = vmatpush1.bf16.msra.mxu0 %v711
        %715 = vmatprep.subr.bf16.mxu0 0
        %716 = vmatpush1.bf16.msra.mxu0 0
        %717 = vmatprep.subr.bf16.mxu0 0
        %718 = vmatpush1.bf16.msra.mxu0 0
        %719 = vmatprep.subr.bf16.mxu0 0
        %720 = vmatpush1.bf16.msra.mxu0 0
        %721 = vmatprep.subr.bf16.mxu0 0
        %722 = vmatpush1.bf16.msra.mxu0 0
        %723 = vmatprep.subr.bf16.mxu0 0
        %724 = vmatpush1.bf16.msra.mxu0 0
        %725 = vmatprep.subr.bf16.mxu0 0
        %726 = vmatpush1.bf16.msra.mxu0 0
        %727 = vmatprep.subr.bf16.mxu0 0
        %728 = vmatpush1.bf16.msra.mxu0 0
        %729 = vmatprep.subr.bf16.mxu0 0
        %730 = vmatpush1.bf16.msra.mxu0 0
        %731 = vmatprep.subr.bf16.mxu0 0
        %732 = vmatpush1.bf16.msra.mxu0 0
        %733 = vmatprep.subr.bf16.mxu0 0
        %734 = vmatpush1.bf16.msra.mxu0 0
        %735 = vmatprep.subr.bf16.mxu0 0
        %736 = vmatpush1.bf16.msra.mxu0 0
        %737 = vmatprep.subr.bf16.mxu0 0
        %738 = vmatpush1.bf16.msra.mxu0 0
        %739 = vmatprep.subr.bf16.mxu0 0
        %740 = vmatpush1.bf16.msra.mxu0 0
        %741 = vmatprep.subr.bf16.mxu0 0
        %742 = vmatpush1.bf16.msra.mxu0 0
        %743 = vmatprep.subr.bf16.mxu0 0
        %744 = vmatpush1.bf16.msra.mxu0 0
        %745 = vmatprep.mubr.bf16.mxu0 0
        %746 = vmatmul.mubr.bf16.gmra.mrb[0].mxu0 %v707
        %v747 = vpop.f32.mrb[0].mxu0
        %v748 = vadd.f32 0.0, %v747
        %v749 = vpop.f32.mrb[0].mxu0
        %v750 = vpop.f32.mrb[0].mxu0
        %v751 = vpop.f32.mrb[0].mxu0
        %752 = vdwg.mxu0
        %v754 = vsel %vm383, %v703, 0
        %v757 = vsel %vm709, %v376, 0
        %759 = vmatprep.subr.bf16.mxu0 0
        %760 = vmatpush1.bf16.msra.mxu0 %v757
        %761 = vmatprep.subr.bf16.mxu0 0
        %762 = vmatpush1.bf16.msra.mxu0 0
        %763 = vmatprep.subr.bf16.mxu0 0
        %764 = vmatpush1.bf16.msra.mxu0 0
        %765 = vmatprep.subr.bf16.mxu0 0
        %766 = vmatpush1.bf16.msra.mxu0 0
        %767 = vmatprep.subr.bf16.mxu0 0
        %768 = vmatpush1.bf16.msra.mxu0 0
        %769 = vmatprep.subr.bf16.mxu0 0
        %770 = vmatpush1.bf16.msra.mxu0 0
        %771 = vmatprep.subr.bf16.mxu0 0
        %772 = vmatpush1.bf16.msra.mxu0 0
        %773 = vmatprep.subr.bf16.mxu0 0
        %774 = vmatpush1.bf16.msra.mxu0 0
        %775 = vmatprep.subr.bf16.mxu0 0
        %776 = vmatpush1.bf16.msra.mxu0 0
        %777 = vmatprep.subr.bf16.mxu0 0
        %778 = vmatpush1.bf16.msra.mxu0 0
        %779 = vmatprep.subr.bf16.mxu0 0
        %780 = vmatpush1.bf16.msra.mxu0 0
        %781 = vmatprep.subr.bf16.mxu0 0
        %782 = vmatpush1.bf16.msra.mxu0 0
        %783 = vmatprep.subr.bf16.mxu0 0
        %784 = vmatpush1.bf16.msra.mxu0 0
        %785 = vmatprep.subr.bf16.mxu0 0
        %786 = vmatpush1.bf16.msra.mxu0 0
        %787 = vmatprep.subr.bf16.mxu0 0
        %788 = vmatpush1.bf16.msra.mxu0 0
        %789 = vmatprep.subr.bf16.mxu0 0
        %790 = vmatpush1.bf16.msra.mxu0 0
        %791 = vmatprep.mubr.bf16.mxu0 0
        %792 = vmatmul.mubr.bf16.gmra.mrb[0].mxu0 %v754
        %v793 = vpop.f32.mrb[0].mxu0
        %v794 = vadd.f32 0.0, %v793
        %v795 = vpop.f32.mrb[0].mxu0
        %v796 = vpop.f32.mrb[0].mxu0
        %v797 = vpop.f32.mrb[0].mxu0
        %798 = vdwg.mxu0
        %v800 = vsel %vm383, %v704, 0
        %v803 = vsel %vm709, %v377, 0
        %805 = vmatprep.subr.bf16.mxu0 0
        %806 = vmatpush1.bf16.msra.mxu0 %v803
        %807 = vmatprep.subr.bf16.mxu0 0
        %808 = vmatpush1.bf16.msra.mxu0 0
        %809 = vmatprep.subr.bf16.mxu0 0
        %810 = vmatpush1.bf16.msra.mxu0 0
        %811 = vmatprep.subr.bf16.mxu0 0
        %812 = vmatpush1.bf16.msra.mxu0 0
        %813 = vmatprep.subr.bf16.mxu0 0
        %814 = vmatpush1.bf16.msra.mxu0 0
        %815 = vmatprep.subr.bf16.mxu0 0
        %816 = vmatpush1.bf16.msra.mxu0 0
        %817 = vmatprep.subr.bf16.mxu0 0
        %818 = vmatpush1.bf16.msra.mxu0 0
        %819 = vmatprep.subr.bf16.mxu0 0
        %820 = vmatpush1.bf16.msra.mxu0 0
        %821 = vmatprep.subr.bf16.mxu0 0
        %822 = vmatpush1.bf16.msra.mxu0 0
        %823 = vmatprep.subr.bf16.mxu0 0
        %824 = vmatpush1.bf16.msra.mxu0 0
        %825 = vmatprep.subr.bf16.mxu0 0
        %826 = vmatpush1.bf16.msra.mxu0 0
        %827 = vmatprep.subr.bf16.mxu0 0
        %828 = vmatpush1.bf16.msra.mxu0 0
        %829 = vmatprep.subr.bf16.mxu0 0
        %830 = vmatpush1.bf16.msra.mxu0 0
        %831 = vmatprep.subr.bf16.mxu0 0
        %832 = vmatpush1.bf16.msra.mxu0 0
        %833 = vmatprep.subr.bf16.mxu0 0
        %834 = vmatpush1.bf16.msra.mxu0 0
        %835 = vmatprep.subr.bf16.mxu0 0
        %836 = vmatpush1.bf16.msra.mxu0 0
        %837 = vmatprep.mubr.bf16.mxu0 0
        %838 = vmatmul.mubr.bf16.gmra.mrb[0].mxu0 %v800
        %v839 = vpop.f32.mrb[0].mxu0
        %v840 = vadd.f32 0.0, %v839
        %v841 = vpop.f32.mrb[0].mxu0
        %v842 = vpop.f32.mrb[0].mxu0
        %v843 = vpop.f32.mrb[0].mxu0
        %844 = vdwg.mxu0
        %v846 = vsel %vm383, %v705, 0
        %v849 = vsel %vm709, %v378, 0
        %851 = vmatprep.subr.bf16.mxu0 0
        %852 = vmatpush1.bf16.msra.mxu0 %v849
        %853 = vmatprep.subr.bf16.mxu0 0
        %854 = vmatpush1.bf16.msra.mxu0 0
        %855 = vmatprep.subr.bf16.mxu0 0
        %856 = vmatpush1.bf16.msra.mxu0 0
        %857 = vmatprep.subr.bf16.mxu0 0
        %858 = vmatpush1.bf16.msra.mxu0 0
        %859 = vmatprep.subr.bf16.mxu0 0
        %860 = vmatpush1.bf16.msra.mxu0 0
        %861 = vmatprep.subr.bf16.mxu0 0
        %862 = vmatpush1.bf16.msra.mxu0 0
        %863 = vmatprep.subr.bf16.mxu0 0
        %864 = vmatpush1.bf16.msra.mxu0 0
        %865 = vmatprep.subr.bf16.mxu0 0
        %866 = vmatpush1.bf16.msra.mxu0 0
        %867 = vmatprep.subr.bf16.mxu0 0
        %868 = vmatpush1.bf16.msra.mxu0 0
        %869 = vmatprep.subr.bf16.mxu0 0
        %870 = vmatpush1.bf16.msra.mxu0 0
        %871 = vmatprep.subr.bf16.mxu0 0
        %872 = vmatpush1.bf16.msra.mxu0 0
        %873 = vmatprep.subr.bf16.mxu0 0
        %874 = vmatpush1.bf16.msra.mxu0 0
        %875 = vmatprep.subr.bf16.mxu0 0
        %876 = vmatpush1.bf16.msra.mxu0 0
        %877 = vmatprep.subr.bf16.mxu0 0
        %878 = vmatpush1.bf16.msra.mxu0 0
        %879 = vmatprep.subr.bf16.mxu0 0
        %880 = vmatpush1.bf16.msra.mxu0 0
        %881 = vmatprep.subr.bf16.mxu0 0
        %882 = vmatpush1.bf16.msra.mxu0 0
        %883 = vmatprep.mubr.bf16.mxu0 0
        %884 = vmatmul.mubr.bf16.gmra.mrb[0].mxu0 %v846
        %v885 = vpop.f32.mrb[0].mxu0
        %v886 = vadd.f32 0.0, %v885
        %v887 = vpop.f32.mrb[0].mxu0
        %v888 = vpop.f32.mrb[0].mxu0
        %v889 = vpop.f32.mrb[0].mxu0
        %890 = vdwg.mxu0
        %v891 = vadd.f32 %v698, %v748
        %v892 = vadd.f32 %v699, %v794
        %v893 = vadd.f32 %v700, %v840
        %v894 = vadd.f32 %v701, %v886
        %895 = vst.msk [vmem:[#allocation5] sm:$0xff] %vm383, %v891
        %896 = vst.msk [vmem:[#allocation5 + $0x8] sm:$0xff] %vm383, %v892
        %897 = vst.msk [vmem:[#allocation5 + $0x10] sm:$0xff] %vm383, %v893
        %898 = vst.msk [vmem:[#allocation5 + $0x18] sm:$0xff] %vm383, %v894
        %899 = vst.msk [vmem:[#allocation3] sm:$0xff] %vm669, %v597
        %900 = vst.msk [vmem:[#allocation3 + $0x8] sm:$0xff] %vm669, %v598
        %901 = vst.msk [vmem:[#allocation3 + $0x10] sm:$0xff] %vm669, %v599
        %902 = vst.msk [vmem:[#allocation3 + $0x18] sm:$0xff] %vm669, %v600
      $region40: #{attention_forward.4} parent=31 // pred_fallthru
        _
      // Predicated region
      $region41: #{attention_forward.4} parent=31 // pred_check
        %p903 = pneg %p363
      $region42: #{attention_forward.4} parent=31 // pred_check_branch
        %905 = sbr.rel (%p903) target = $region44
      $region43: #{attention_forward.4} parent=31 // pred_region
        %v906 = vld [vmem:[%s307] sm:$0xf]
        %v907 = vld [vmem:[%s307 + $0x4] sm:$0xf]
        %v908 = vld [vmem:[%s307 + $0x8] sm:$0xf]
        %v909 = vld [vmem:[%s307 + $0xc] sm:$0xf]
        %v910 = vld [vmem:[%s320] sm:$0xf]
        %v911 = vld [vmem:[%s320 + $0x4] sm:$0xf]
        %v912 = vld [vmem:[%s320 + $0x8] sm:$0xf]
        %v913 = vld [vmem:[%s320 + $0xc] sm:$0xf]
        %v914 = vld [vmem:[#allocation2] sm:$0xf]
        %v915 = vld [vmem:[#allocation2 + $0x4] sm:$0xf]
        %v916 = vld [vmem:[#allocation2 + $0x8] sm:$0xf]
        %v917 = vld [vmem:[#allocation2 + $0xc] sm:$0xf]
        %vm918 = vcmask 64512
        %v920 = vsel %vm918, %v914, 0
        %v923 = vsel %vm918, %v906, 0
        %925 = vmatprep.subr.bf16.mxu0 0
        %926 = vmatpush1.bf16.xpose.msra.mxu0 %v923
        %927 = vmatprep.subr.bf16.mxu0 0
        %928 = vmatpush1.bf16.xpose.msra.mxu0 0
        %929 = vmatprep.subr.bf16.mxu0 0
        %930 = vmatpush1.bf16.xpose.msra.mxu0 0
        %931 = vmatprep.subr.bf16.mxu0 0
        %932 = vmatpush1.bf16.xpose.msra.mxu0 0
        %933 = vmatprep.subr.bf16.mxu0 0
        %934 = vmatpush1.bf16.xpose.msra.mxu0 0
        %935 = vmatprep.subr.bf16.mxu0 0
        %936 = vmatpush1.bf16.xpose.msra.mxu0 0
        %937 = vmatprep.subr.bf16.mxu0 0
        %938 = vmatpush1.bf16.xpose.msra.mxu0 0
        %939 = vmatprep.subr.bf16.mxu0 0
        %940 = vmatpush1.bf16.xpose.msra.mxu0 0
        %941 = vmatprep.subr.bf16.mxu0 0
        %942 = vmatpush1.bf16.xpose.msra.mxu0 0
        %943 = vmatprep.subr.bf16.mxu0 0
        %944 = vmatpush1.bf16.xpose.msra.mxu0 0
        %945 = vmatprep.subr.bf16.mxu0 0
        %946 = vmatpush1.bf16.xpose.msra.mxu0 0
        %947 = vmatprep.subr.bf16.mxu0 0
        %948 = vmatpush1.bf16.xpose.msra.mxu0 0
        %949 = vmatprep.subr.bf16.mxu0 0
        %950 = vmatpush1.bf16.xpose.msra.mxu0 0
        %951 = vmatprep.subr.bf16.mxu0 0
        %952 = vmatpush1.bf16.xpose.msra.mxu0 0
        %953 = vmatprep.subr.bf16.mxu0 0
        %954 = vmatpush1.bf16.xpose.msra.mxu0 0
        %955 = vmatprep.subr.bf16.mxu0 0
        %956 = vmatpush1.bf16.xpose.msra.mxu0 0
        %957 = vmatprep.mubr.bf16.mxu0 0
        %958 = vmatmul.mubr.bf16.gmra.mrb[0].mxu0 %v920
        %v959 = vpop.f32.mrb[0].mxu0
        %v960 = vadd.f32 0.0, %v959
        %v961 = vpop.f32.mrb[0].mxu0
        %v962 = vpop.f32.mrb[0].mxu0
        %v963 = vpop.f32.mrb[0].mxu0
        %964 = vdwg.mxu0
        %v966 = vsel %vm918, %v915, 0
        %v969 = vsel %vm918, %v907, 0
        %971 = vmatprep.subr.bf16.mxu0 0
        %972 = vmatpush1.bf16.xpose.msra.mxu0 %v969
        %973 = vmatprep.subr.bf16.mxu0 0
        %974 = vmatpush1.bf16.xpose.msra.mxu0 0
        %975 = vmatprep.subr.bf16.mxu0 0
        %976 = vmatpush1.bf16.xpose.msra.mxu0 0
        %977 = vmatprep.subr.bf16.mxu0 0
        %978 = vmatpush1.bf16.xpose.msra.mxu0 0
        %979 = vmatprep.subr.bf16.mxu0 0
        %980 = vmatpush1.bf16.xpose.msra.mxu0 0
        %981 = vmatprep.subr.bf16.mxu0 0
        %982 = vmatpush1.bf16.xpose.msra.mxu0 0
        %983 = vmatprep.subr.bf16.mxu0 0
        %984 = vmatpush1.bf16.xpose.msra.mxu0 0
        %985 = vmatprep.subr.bf16.mxu0 0
        %986 = vmatpush1.bf16.xpose.msra.mxu0 0
        %987 = vmatprep.subr.bf16.mxu0 0
        %988 = vmatpush1.bf16.xpose.msra.mxu0 0
        %989 = vmatprep.subr.bf16.mxu0 0
        %990 = vmatpush1.bf16.xpose.msra.mxu0 0
        %991 = vmatprep.subr.bf16.mxu0 0
        %992 = vmatpush1.bf16.xpose.msra.mxu0 0
        %993 = vmatprep.subr.bf16.mxu0 0
        %994 = vmatpush1.bf16.xpose.msra.mxu0 0
        %995 = vmatprep.subr.bf16.mxu0 0
        %996 = vmatpush1.bf16.xpose.msra.mxu0 0
        %997 = vmatprep.subr.bf16.mxu0 0
        %998 = vmatpush1.bf16.xpose.msra.mxu0 0
        %999 = vmatprep.subr.bf16.mxu0 0
        %1000 = vmatpush1.bf16.xpose.msra.mxu0 0
        %1001 = vmatprep.subr.bf16.mxu0 0
        %1002 = vmatpush1.bf16.xpose.msra.mxu0 0
        %1003 = vmatprep.mubr.bf16.mxu0 0
        %1004 = vmatmul.mubr.bf16.gmra.mrb[0].mxu0 %v966
        %v1005 = vpop.f32.mrb[0].mxu0
        %v1006 = vadd.f32 0.0, %v1005
        %v1007 = vpop.f32.mrb[0].mxu0
        %v1008 = vpop.f32.mrb[0].mxu0
        %v1009 = vpop.f32.mrb[0].mxu0
        %1010 = vdwg.mxu0
        %v1012 = vsel %vm918, %v916, 0
        %v1015 = vsel %vm918, %v908, 0
        %1017 = vmatprep.subr.bf16.mxu0 0
        %1018 = vmatpush1.bf16.xpose.msra.mxu0 %v1015
        %1019 = vmatprep.subr.bf16.mxu0 0
        %1020 = vmatpush1.bf16.xpose.msra.mxu0 0
        %1021 = vmatprep.subr.bf16.mxu0 0
        %1022 = vmatpush1.bf16.xpose.msra.mxu0 0
        %1023 = vmatprep.subr.bf16.mxu0 0
        %1024 = vmatpush1.bf16.xpose.msra.mxu0 0
        %1025 = vmatprep.subr.bf16.mxu0 0
        %1026 = vmatpush1.bf16.xpose.msra.mxu0 0
        %1027 = vmatprep.subr.bf16.mxu0 0
        %1028 = vmatpush1.bf16.xpose.msra.mxu0 0
        %1029 = vmatprep.subr.bf16.mxu0 0
        %1030 = vmatpush1.bf16.xpose.msra.mxu0 0
        %1031 = vmatprep.subr.bf16.mxu0 0
        %1032 = vmatpush1.bf16.xpose.msra.mxu0 0
        %1033 = vmatprep.subr.bf16.mxu0 0
        %1034 = vmatpush1.bf16.xpose.msra.mxu0 0
        %1035 = vmatprep.subr.bf16.mxu0 0
        %1036 = vmatpush1.bf16.xpose.msra.mxu0 0
        %1037 = vmatprep.subr.bf16.mxu0 0
        %1038 = vmatpush1.bf16.xpose.msra.mxu0 0
        %1039 = vmatprep.subr.bf16.mxu0 0
        %1040 = vmatpush1.bf16.xpose.msra.mxu0 0
        %1041 = vmatprep.subr.bf16.mxu0 0
        %1042 = vmatpush1.bf16.xpose.msra.mxu0 0
        %1043 = vmatprep.subr.bf16.mxu0 0
        %1044 = vmatpush1.bf16.xpose.msra.mxu0 0
        %1045 = vmatprep.subr.bf16.mxu0 0
        %1046 = vmatpush1.bf16.xpose.msra.mxu0 0
        %1047 = vmatprep.subr.bf16.mxu0 0
        %1048 = vmatpush1.bf16.xpose.msra.mxu0 0
        %1049 = vmatprep.mubr.bf16.mxu0 0
        %1050 = vmatmul.mubr.bf16.gmra.mrb[0].mxu0 %v1012
        %v1051 = vpop.f32.mrb[0].mxu0
        %v1052 = vadd.f32 0.0, %v1051
        %v1053 = vpop.f32.mrb[0].mxu0
        %v1054 = vpop.f32.mrb[0].mxu0
        %v1055 = vpop.f32.mrb[0].mxu0
        %1056 = vdwg.mxu0
        %v1058 = vsel %vm918, %v917, 0
        %v1061 = vsel %vm918, %v909, 0
        %1063 = vmatprep.subr.bf16.mxu0 0
        %1064 = vmatpush1.bf16.xpose.msra.mxu0 %v1061
        %1065 = vmatprep.subr.bf16.mxu0 0
        %1066 = vmatpush1.bf16.xpose.msra.mxu0 0
        %1067 = vmatprep.subr.bf16.mxu0 0
        %1068 = vmatpush1.bf16.xpose.msra.mxu0 0
        %1069 = vmatprep.subr.bf16.mxu0 0
        %1070 = vmatpush1.bf16.xpose.msra.mxu0 0
        %1071 = vmatprep.subr.bf16.mxu0 0
        %1072 = vmatpush1.bf16.xpose.msra.mxu0 0
        %1073 = vmatprep.subr.bf16.mxu0 0
        %1074 = vmatpush1.bf16.xpose.msra.mxu0 0
        %1075 = vmatprep.subr.bf16.mxu0 0
        %1076 = vmatpush1.bf16.xpose.msra.mxu0 0
        %1077 = vmatprep.subr.bf16.mxu0 0
        %1078 = vmatpush1.bf16.xpose.msra.mxu0 0
        %1079 = vmatprep.subr.bf16.mxu0 0
        %1080 = vmatpush1.bf16.xpose.msra.mxu0 0
        %1081 = vmatprep.subr.bf16.mxu0 0
        %1082 = vmatpush1.bf16.xpose.msra.mxu0 0
        %1083 = vmatprep.subr.bf16.mxu0 0
        %1084 = vmatpush1.bf16.xpose.msra.mxu0 0
        %1085 = vmatprep.subr.bf16.mxu0 0
        %1086 = vmatpush1.bf16.xpose.msra.mxu0 0
        %1087 = vmatprep.subr.bf16.mxu0 0
        %1088 = vmatpush1.bf16.xpose.msra.mxu0 0
        %1089 = vmatprep.subr.bf16.mxu0 0
        %1090 = vmatpush1.bf16.xpose.msra.mxu0 0
        %1091 = vmatprep.subr.bf16.mxu0 0
        %1092 = vmatpush1.bf16.xpose.msra.mxu0 0
        %1093 = vmatprep.subr.bf16.mxu0 0
        %1094 = vmatpush1.bf16.xpose.msra.mxu0 0
        %1095 = vmatprep.mubr.bf16.mxu0 0
        %1096 = vmatmul.mubr.bf16.gmra.mrb[0].mxu0 %v1058
        %v1097 = vpop.f32.mrb[0].mxu0
        %v1098 = vadd.f32 0.0, %v1097
        %v1099 = vpop.f32.mrb[0].mxu0
        %v1100 = vpop.f32.mrb[0].mxu0
        %v1101 = vpop.f32.mrb[0].mxu0
        %1102 = vdwg.mxu0
        %v1103 = vld [vmem:[#allocation3] sm:$0xff]
        %v1104 = vld [vmem:[#allocation3 + $0x8] sm:$0xff]
        %v1105 = vld [vmem:[#allocation3 + $0x10] sm:$0xff]
        %v1106 = vld [vmem:[#allocation3 + $0x18] sm:$0xff]
        %v1107 = vsel %vm918, %v960, -inf
        %1108 = vmax.xlane.f32.xlu0 %v1107
        %v1109 = vpop.xlane.xlu0 %1108
        %v1110 = vsel %vm918, %v1006, -inf
        %1111 = vmax.xlane.f32.xlu0 %v1110
        %v1112 = vpop.xlane.xlu0 %1111
        %v1113 = vsel %vm918, %v1052, -inf
        %1114 = vmax.xlane.f32.xlu0 %v1113
        %v1115 = vpop.xlane.xlu0 %1114
        %v1116 = vsel %vm918, %v1098, -inf
        %1117 = vmax.xlane.f32.xlu0 %v1116
        %v1118 = vpop.xlane.xlu0 %1117
        %v1119 = vmax.f32 %v1103, %v1109
        %v1120 = vmax.f32 %v1104, %v1112
        %v1121 = vmax.f32 %v1105, %v1115
        %v1122 = vmax.f32 %v1106, %v1118
        %v1123 = vsub.f32 %v1103, %v1119
        %v1124 = vsub.f32 %v1104, %v1120
        %v1125 = vsub.f32 %v1105, %v1121
        %v1126 = vsub.f32 %v1106, %v1122
        %v1127 = vmul.f32 %v1123, 1.442695
        %v1128 = vpow.pop %v1127
        %v1129 = vmul.f32 %v1124, 1.442695
        %v1130 = vpow.pop %v1129
        %v1131 = vmul.f32 %v1125, 1.442695
        %v1132 = vpow.pop %v1131
        %v1133 = vmul.f32 %v1126, 1.442695
        %v1134 = vpow.pop %v1133
        %1136 = vset.pattern.permute.xlu0 0
        %1137 = vperm.xlu0 %1136, %v1119
        %v1138 = vpop.permute.xlu0 %1137
        %1141 = vset.pattern.permute.xlu0 0
        %1142 = vperm.xlu0 %1141, %v1120
        %v1143 = vpop.permute.xlu0 %1142
        %1146 = vset.pattern.permute.xlu0 0
        %1147 = vperm.xlu0 %1146, %v1121
        %v1148 = vpop.permute.xlu0 %1147
        %1151 = vset.pattern.permute.xlu0 0
        %1152 = vperm.xlu0 %1151, %v1122
        %v1153 = vpop.permute.xlu0 %1152
        %v1155 = vsub.f32 %v960, %v1138
        %v1156 = vsub.f32 %v1006, %v1143
        %v1157 = vsub.f32 %v1052, %v1148
        %v1158 = vsub.f32 %v1098, %v1153
        %v1159 = vmul.f32 %v1155, 1.442695
        %v1160 = vpow.pop %v1159
        %v1161 = vmul.f32 %v1156, 1.442695
        %v1162 = vpow.pop %v1161
        %v1163 = vmul.f32 %v1157, 1.442695
        %v1164 = vpow.pop %v1163
        %v1165 = vmul.f32 %v1158, 1.442695
        %v1166 = vpow.pop %v1165
        %v1167 = vld [vmem:[#allocation4] sm:$0xff]
        %v1168 = vld [vmem:[#allocation4 + $0x8] sm:$0xff]
        %v1169 = vld [vmem:[#allocation4 + $0x10] sm:$0xff]
        %v1170 = vld [vmem:[#allocation4 + $0x18] sm:$0xff]
        %v1171 = vmul.f32 %v1128, %v1167
        %v1172 = vmul.f32 %v1130, %v1168
        %v1173 = vmul.f32 %v1132, %v1169
        %v1174 = vmul.f32 %v1134, %v1170
        %v1175 = vsel %vm918, %v1160, 0.0
        %1176 = vadd.xlane.f32.xlu0 %v1175
        %v1177 = vpop.xlane.xlu0 %1176
        %v1178 = vsel %vm918, %v1162, 0.0
        %1179 = vadd.xlane.f32.xlu0 %v1178
        %v1180 = vpop.xlane.xlu0 %1179
        %v1181 = vsel %vm918, %v1164, 0.0
        %1182 = vadd.xlane.f32.xlu0 %v1181
        %v1183 = vpop.xlane.xlu0 %1182
        %v1184 = vsel %vm918, %v1166, 0.0
        %1185 = vadd.xlane.f32.xlu0 %v1184
        %v1186 = vpop.xlane.xlu0 %1185
        %v1187 = vadd.f32 %v1171, %v1177
        %v1188 = vadd.f32 %v1172, %v1180
        %v1189 = vadd.f32 %v1173, %v1183
        %v1190 = vadd.f32 %v1174, %v1186
        %vm1191 = vcmask 7168
        %1192 = vst.msk [vmem:[#allocation4] sm:$0xff] %vm1191, %v1187
        %1193 = vst.msk [vmem:[#allocation4 + $0x8] sm:$0xff] %vm1191, %v1188
        %1194 = vst.msk [vmem:[#allocation4 + $0x10] sm:$0xff] %vm1191, %v1189
        %1195 = vst.msk [vmem:[#allocation4 + $0x18] sm:$0xff] %vm1191, %v1190
        %v1196 = vld [vmem:[#allocation5] sm:$0xff]
        %v1197 = vld [vmem:[#allocation5 + $0x8] sm:$0xff]
        %v1198 = vld [vmem:[#allocation5 + $0x10] sm:$0xff]
        %v1199 = vld [vmem:[#allocation5 + $0x18] sm:$0xff]
        %1201 = vset.pattern.permute.xlu0 0
        %1202 = vperm.xlu0 %1201, %v1128
        %v1203 = vpop.permute.xlu0 %1202
        %1206 = vset.pattern.permute.xlu0 0
        %1207 = vperm.xlu0 %1206, %v1130
        %v1208 = vpop.permute.xlu0 %1207
        %1211 = vset.pattern.permute.xlu0 0
        %1212 = vperm.xlu0 %1211, %v1132
        %v1213 = vpop.permute.xlu0 %1212
        %1216 = vset.pattern.permute.xlu0 0
        %1217 = vperm.xlu0 %1216, %v1134
        %v1218 = vpop.permute.xlu0 %1217
        %v1220 = vmul.f32 %v1203, %v1196
        %v1221 = vmul.f32 %v1208, %v1197
        %v1222 = vmul.f32 %v1213, %v1198
        %v1223 = vmul.f32 %v1218, %v1199
        %v1224 = vpack.c.bf16 %v1160, %v1160
        %v1225 = vpack.c.bf16 %v1162, %v1162
        %v1226 = vpack.c.bf16 %v1164, %v1164
        %v1227 = vpack.c.bf16 %v1166, %v1166
        %v1229 = vsel %vm918, %v1224, 0
        %vm1231 = vcmask 1043456
        %v1233 = vsel %vm1231, %v910, 0
        %1235 = vmatprep.subr.bf16.mxu0 0
        %1236 = vmatpush1.bf16.msra.mxu0 %v1233
        %1237 = vmatprep.subr.bf16.mxu0 0
        %1238 = vmatpush1.bf16.msra.mxu0 0
        %1239 = vmatprep.subr.bf16.mxu0 0
        %1240 = vmatpush1.bf16.msra.mxu0 0
        %1241 = vmatprep.subr.bf16.mxu0 0
        %1242 = vmatpush1.bf16.msra.mxu0 0
        %1243 = vmatprep.subr.bf16.mxu0 0
        %1244 = vmatpush1.bf16.msra.mxu0 0
        %1245 = vmatprep.subr.bf16.mxu0 0
        %1246 = vmatpush1.bf16.msra.mxu0 0
        %1247 = vmatprep.subr.bf16.mxu0 0
        %1248 = vmatpush1.bf16.msra.mxu0 0
        %1249 = vmatprep.subr.bf16.mxu0 0
        %1250 = vmatpush1.bf16.msra.mxu0 0
        %1251 = vmatprep.subr.bf16.mxu0 0
        %1252 = vmatpush1.bf16.msra.mxu0 0
        %1253 = vmatprep.subr.bf16.mxu0 0
        %1254 = vmatpush1.bf16.msra.mxu0 0
        %1255 = vmatprep.subr.bf16.mxu0 0
        %1256 = vmatpush1.bf16.msra.mxu0 0
        %1257 = vmatprep.subr.bf16.mxu0 0
        %1258 = vmatpush1.bf16.msra.mxu0 0
        %1259 = vmatprep.subr.bf16.mxu0 0
        %1260 = vmatpush1.bf16.msra.mxu0 0
        %1261 = vmatprep.subr.bf16.mxu0 0
        %1262 = vmatpush1.bf16.msra.mxu0 0
        %1263 = vmatprep.subr.bf16.mxu0 0
        %1264 = vmatpush1.bf16.msra.mxu0 0
        %1265 = vmatprep.subr.bf16.mxu0 0
        %1266 = vmatpush1.bf16.msra.mxu0 0
        %1267 = vmatprep.mubr.bf16.mxu0 0
        %1268 = vmatmul.mubr.bf16.gmra.mrb[0].mxu0 %v1229
        %v1269 = vpop.f32.mrb[0].mxu0
        %v1270 = vadd.f32 0.0, %v1269
        %v1271 = vpop.f32.mrb[0].mxu0
        %v1272 = vpop.f32.mrb[0].mxu0
        %v1273 = vpop.f32.mrb[0].mxu0
        %1274 = vdwg.mxu0
        %v1276 = vsel %vm918, %v1225, 0
        %v1279 = vsel %vm1231, %v911, 0
        %1281 = vmatprep.subr.bf16.mxu0 0
        %1282 = vmatpush1.bf16.msra.mxu0 %v1279
        %1283 = vmatprep.subr.bf16.mxu0 0
        %1284 = vmatpush1.bf16.msra.mxu0 0
        %1285 = vmatprep.subr.bf16.mxu0 0
        %1286 = vmatpush1.bf16.msra.mxu0 0
        %1287 = vmatprep.subr.bf16.mxu0 0
        %1288 = vmatpush1.bf16.msra.mxu0 0
        %1289 = vmatprep.subr.bf16.mxu0 0
        %1290 = vmatpush1.bf16.msra.mxu0 0
        %1291 = vmatprep.subr.bf16.mxu0 0
        %1292 = vmatpush1.bf16.msra.mxu0 0
        %1293 = vmatprep.subr.bf16.mxu0 0
        %1294 = vmatpush1.bf16.msra.mxu0 0
        %1295 = vmatprep.subr.bf16.mxu0 0
        %1296 = vmatpush1.bf16.msra.mxu0 0
        %1297 = vmatprep.subr.bf16.mxu0 0
        %1298 = vmatpush1.bf16.msra.mxu0 0
        %1299 = vmatprep.subr.bf16.mxu0 0
        %1300 = vmatpush1.bf16.msra.mxu0 0
        %1301 = vmatprep.subr.bf16.mxu0 0
        %1302 = vmatpush1.bf16.msra.mxu0 0
        %1303 = vmatprep.subr.bf16.mxu0 0
        %1304 = vmatpush1.bf16.msra.mxu0 0
        %1305 = vmatprep.subr.bf16.mxu0 0
        %1306 = vmatpush1.bf16.msra.mxu0 0
        %1307 = vmatprep.subr.bf16.mxu0 0
        %1308 = vmatpush1.bf16.msra.mxu0 0
        %1309 = vmatprep.subr.bf16.mxu0 0
        %1310 = vmatpush1.bf16.msra.mxu0 0
        %1311 = vmatprep.subr.bf16.mxu0 0
        %1312 = vmatpush1.bf16.msra.mxu0 0
        %1313 = vmatprep.mubr.bf16.mxu0 0
        %1314 = vmatmul.mubr.bf16.gmra.mrb[0].mxu0 %v1276
        %v1315 = vpop.f32.mrb[0].mxu0
        %v1316 = vadd.f32 0.0, %v1315
        %v1317 = vpop.f32.mrb[0].mxu0
        %v1318 = vpop.f32.mrb[0].mxu0
        %v1319 = vpop.f32.mrb[0].mxu0
        %1320 = vdwg.mxu0
        %v1322 = vsel %vm918, %v1226, 0
        %v1325 = vsel %vm1231, %v912, 0
        %1327 = vmatprep.subr.bf16.mxu0 0
        %1328 = vmatpush1.bf16.msra.mxu0 %v1325
        %1329 = vmatprep.subr.bf16.mxu0 0
        %1330 = vmatpush1.bf16.msra.mxu0 0
        %1331 = vmatprep.subr.bf16.mxu0 0
        %1332 = vmatpush1.bf16.msra.mxu0 0
        %1333 = vmatprep.subr.bf16.mxu0 0
        %1334 = vmatpush1.bf16.msra.mxu0 0
        %1335 = vmatprep.subr.bf16.mxu0 0
        %1336 = vmatpush1.bf16.msra.mxu0 0
        %1337 = vmatprep.subr.bf16.mxu0 0
        %1338 = vmatpush1.bf16.msra.mxu0 0
        %1339 = vmatprep.subr.bf16.mxu0 0
        %1340 = vmatpush1.bf16.msra.mxu0 0
        %1341 = vmatprep.subr.bf16.mxu0 0
        %1342 = vmatpush1.bf16.msra.mxu0 0
        %1343 = vmatprep.subr.bf16.mxu0 0
        %1344 = vmatpush1.bf16.msra.mxu0 0
        %1345 = vmatprep.subr.bf16.mxu0 0
        %1346 = vmatpush1.bf16.msra.mxu0 0
        %1347 = vmatprep.subr.bf16.mxu0 0
        %1348 = vmatpush1.bf16.msra.mxu0 0
        %1349 = vmatprep.subr.bf16.mxu0 0
        %1350 = vmatpush1.bf16.msra.mxu0 0
        %1351 = vmatprep.subr.bf16.mxu0 0
        %1352 = vmatpush1.bf16.msra.mxu0 0
        %1353 = vmatprep.subr.bf16.mxu0 0
        %1354 = vmatpush1.bf16.msra.mxu0 0
        %1355 = vmatprep.subr.bf16.mxu0 0
        %1356 = vmatpush1.bf16.msra.mxu0 0
        %1357 = vmatprep.subr.bf16.mxu0 0
        %1358 = vmatpush1.bf16.msra.mxu0 0
        %1359 = vmatprep.mubr.bf16.mxu0 0
        %1360 = vmatmul.mubr.bf16.gmra.mrb[0].mxu0 %v1322
        %v1361 = vpop.f32.mrb[0].mxu0
        %v1362 = vadd.f32 0.0, %v1361
        %v1363 = vpop.f32.mrb[0].mxu0
        %v1364 = vpop.f32.mrb[0].mxu0
        %v1365 = vpop.f32.mrb[0].mxu0
        %1366 = vdwg.mxu0
        %v1368 = vsel %vm918, %v1227, 0
        %v1371 = vsel %vm1231, %v913, 0
        %1373 = vmatprep.subr.bf16.mxu0 0
        %1374 = vmatpush1.bf16.msra.mxu0 %v1371
        %1375 = vmatprep.subr.bf16.mxu0 0
        %1376 = vmatpush1.bf16.msra.mxu0 0
        %1377 = vmatprep.subr.bf16.mxu0 0
        %1378 = vmatpush1.bf16.msra.mxu0 0
        %1379 = vmatprep.subr.bf16.mxu0 0
        %1380 = vmatpush1.bf16.msra.mxu0 0
        %1381 = vmatprep.subr.bf16.mxu0 0
        %1382 = vmatpush1.bf16.msra.mxu0 0
        %1383 = vmatprep.subr.bf16.mxu0 0
        %1384 = vmatpush1.bf16.msra.mxu0 0
        %1385 = vmatprep.subr.bf16.mxu0 0
        %1386 = vmatpush1.bf16.msra.mxu0 0
        %1387 = vmatprep.subr.bf16.mxu0 0
        %1388 = vmatpush1.bf16.msra.mxu0 0
        %1389 = vmatprep.subr.bf16.mxu0 0
        %1390 = vmatpush1.bf16.msra.mxu0 0
        %1391 = vmatprep.subr.bf16.mxu0 0
        %1392 = vmatpush1.bf16.msra.mxu0 0
        %1393 = vmatprep.subr.bf16.mxu0 0
        %1394 = vmatpush1.bf16.msra.mxu0 0
        %1395 = vmatprep.subr.bf16.mxu0 0
        %1396 = vmatpush1.bf16.msra.mxu0 0
        %1397 = vmatprep.subr.bf16.mxu0 0
        %1398 = vmatpush1.bf16.msra.mxu0 0
        %1399 = vmatprep.subr.bf16.mxu0 0
        %1400 = vmatpush1.bf16.msra.mxu0 0
        %1401 = vmatprep.subr.bf16.mxu0 0
        %1402 = vmatpush1.bf16.msra.mxu0 0
        %1403 = vmatprep.subr.bf16.mxu0 0
        %1404 = vmatpush1.bf16.msra.mxu0 0
        %1405 = vmatprep.mubr.bf16.mxu0 0
        %1406 = vmatmul.mubr.bf16.gmra.mrb[0].mxu0 %v1368
        %v1407 = vpop.f32.mrb[0].mxu0
        %v1408 = vadd.f32 0.0, %v1407
        %v1409 = vpop.f32.mrb[0].mxu0
        %v1410 = vpop.f32.mrb[0].mxu0
        %v1411 = vpop.f32.mrb[0].mxu0
        %1412 = vdwg.mxu0
        %v1413 = vadd.f32 %v1220, %v1270
        %v1414 = vadd.f32 %v1221, %v1316
        %v1415 = vadd.f32 %v1222, %v1362
        %v1416 = vadd.f32 %v1223, %v1408
        %1417 = vst.msk [vmem:[#allocation5] sm:$0xff] %vm918, %v1413
        %1418 = vst.msk [vmem:[#allocation5 + $0x8] sm:$0xff] %vm918, %v1414
        %1419 = vst.msk [vmem:[#allocation5 + $0x10] sm:$0xff] %vm918, %v1415
        %1420 = vst.msk [vmem:[#allocation5 + $0x18] sm:$0xff] %vm918, %v1416
        %1421 = vst.msk [vmem:[#allocation3] sm:$0xff] %vm1191, %v1119
        %1422 = vst.msk [vmem:[#allocation3 + $0x8] sm:$0xff] %vm1191, %v1120
        %1423 = vst.msk [vmem:[#allocation3 + $0x10] sm:$0xff] %vm1191, %v1121
        %1424 = vst.msk [vmem:[#allocation3 + $0x18] sm:$0xff] %vm1191, %v1122
      $region44: #{attention_forward.4} parent=31 // pred_fallthru
        _
      // Predicated region
      $region45: #{attention_forward.4} parent=31 // pred_check
        %p1425 = pneg %p335
      $region46: #{attention_forward.4} parent=31 // pred_check_branch
        %1427 = sbr.rel (%p1425) target = $region48
      $region47: #{attention_forward.4} parent=31 // pred_region
        %v1428 = vld [vmem:[#allocation4] sm:$0xff]
        %v1429 = vld [vmem:[#allocation4 + $0x8] sm:$0xff]
        %v1430 = vld [vmem:[#allocation4 + $0x10] sm:$0xff]
        %v1431 = vld [vmem:[#allocation4 + $0x18] sm:$0xff]
        %v1432 = vrcp.pop %v1428
        %v1433 = vrcp.pop %v1429
        %v1434 = vrcp.pop %v1430
        %v1435 = vrcp.pop %v1431
        %v1436 = vld [vmem:[#allocation5] sm:$0xff]
        %1438 = vset.pattern.permute.xlu0 0
        %1439 = vperm.xlu0 %1438, %v1432
        %v1440 = vpop.permute.xlu0 %1439
        %v1442 = vmul.f32 %v1436, %v1440
        %v1443 = vpack.c.bf16 %v1442, %v1442
        %vm1444 = vcmask 60416
        %1445 = vst.msk [vmem:[%s331] sm:$0xf] %vm1444, %v1443
        %s1446 = scalar_lea.vmem [#allocation5], 8
        %v1447 = vld [vmem:[%s1446] sm:$0xff]
        %1449 = vset.pattern.permute.xlu0 0
        %1450 = vperm.xlu0 %1449, %v1433
        %v1451 = vpop.permute.xlu0 %1450
        %v1453 = vmul.f32 %v1447, %v1451
        %v1454 = vpack.c.bf16 %v1453, %v1453
        %v1456 = vunpack.c.l.b16 %v1454
        %v1457 = vpack.c.b16 %v1456, %v1456
        %1458 = vrot.lane.b32.xlu0 %v1457, 8
        %v1459 = vpop.permute.xlu0 %1458
        %vm1461 = vcmask 126016
        %1462 = vst.msk [vmem:[%s331] sm:$0xf] %vm1461, %v1459
        %s1463 = scalar_lea.vmem [#allocation5], 16
        %v1464 = vld [vmem:[%s1463] sm:$0xff]
        %1466 = vset.pattern.permute.xlu0 0
        %1467 = vperm.xlu0 %1466, %v1434
        %v1468 = vpop.permute.xlu0 %1467
        %v1470 = vmul.f32 %v1464, %v1468
        %v1471 = vpack.c.bf16 %v1470, %v1470
        %v1473 = vunpack.c.l.b16 %v1471
        %v1474 = vpack.c.b16 %v1473, %v1473
        %1475 = vrot.lane.b32.xlu0 %v1474, 16
        %v1476 = vpop.permute.xlu0 %1475
        %vm1478 = vcmask 191616
        %1479 = vst.msk [vmem:[%s331] sm:$0xf] %vm1478, %v1476
        %s1480 = scalar_lea.vmem [#allocation5], 24
        %v1481 = vld [vmem:[%s1480] sm:$0xff]
        %1483 = vset.pattern.permute.xlu0 0
        %1484 = vperm.xlu0 %1483, %v1435
        %v1485 = vpop.permute.xlu0 %1484
        %v1487 = vmul.f32 %v1481, %v1485
        %v1488 = vpack.c.bf16 %v1487, %v1487
        %v1490 = vunpack.c.l.b16 %v1488
        %v1491 = vpack.c.b16 %v1490, %v1490
        %1492 = vrot.lane.b32.xlu0 %v1491, 24
        %v1493 = vpop.permute.xlu0 %1492
        %vm1495 = vcmask 257216
        %1496 = vst.msk [vmem:[%s331] sm:$0xf] %vm1495, %v1493
      $region48: #{attention_forward.4} parent=31 // pred_fallthru
        _
      %p1497 = scmp.lt.s32.totalorder %s20, 1
      %s1498 = scalar_select %p1497, %s20, 1
      %p1499 = scmp.lt.s32.totalorder %s22, 0
      %s1500 = scalar_select %p1499, %s22, 0
      %p1501 = scmp.lt.s32.totalorder %s21, 0
      %s1502 = scalar_select %p1501, %s21, 0
      %s1503 = sadd.s32 %s1502, %s1500
      %s1504 = sadd.s32 %s1503, %s1498
      %s1505 = smul.addr %s1504, 4
      %s1506 = scalar_lea.vmem %s3, %s1505
      // Predicated region
      $region49: #{attention_forward.4} parent=31 // pred_check
        %p1507 = pneg %p152
      $region50: #{attention_forward.4} parent=31 // pred_check_branch
        %1509 = sbr.rel (%p1507) target = $region52
      $region51: #{attention_forward.4} parent=31 // pred_region
        _
      $region52: #{attention_forward.4} parent=31 // pred_fallthru
        _
    $region32: #{attention_forward.4} parent=5 // pred_fallthru
      _
    %p1510 = scmp.le.s32.totalorder 2, %s9
    // Predicated region
    $region53: #{attention_forward.4} parent=5 // pred_check
      %p1511 = pneg %p1510
    $region54: #{attention_forward.4} parent=5 // pred_check_branch
      %1513 = sbr.rel (%p1511) target = $region56
    $region55: #{attention_forward.4} parent=5 // pred_region
      %s1514 = ssub.s32 %s9, 2
      // Predicated region
      $region57: #{attention_forward.4} parent=55 // pred_check
        %p1515 = pneg %p158
      $region58: #{attention_forward.4} parent=55 // pred_check_branch
        %1517 = sbr.rel (%p1515) target = $region60
      $region59: #{attention_forward.4} parent=55 // pred_region
        %p1518 = scmp.lt.s32.totalorder %s24, 1
        %s1519 = scalar_select %p1518, %s24, 1
        %p1520 = scmp.lt.s32.totalorder %s26, 0
        %s1521 = scalar_select %p1520, %s26, 0
        %p1522 = scmp.lt.s32.totalorder %s25, 0
        %s1523 = scalar_select %p1522, %s25, 0
        %s1524 = sadd.s32 %s1523, %s1521
        %s1525 = sadd.s32 %s1524, %s1519
        %s1526 = smul.addr %s1525, 4
        %s1527 = scalar_lea.vmem %s3, %s1526
      $region60: #{attention_forward.4} parent=55 // pred_fallthru
        _
    $region56: #{attention_forward.4} parent=5 // pred_fallthru
      _
  $region6: #{attention_forward.4} parent=0 // loop_footer
    %s13 = sadd.s32 1, %s9
  $region7: #{attention_forward.4} parent=0 // loop_footer_branch
    %8 = sbr.rel target = $region3
  $region8: #{attention_forward.4} parent=0 // loop_exit
    _

</llo_original>
